<compile_context>
chip_gen: v6e
topology: v6e:2x2x1
jax: 0.10.0
libtpu: 0.0.40
codegen_flags: <defaults>
</compile_context>

<pallas_src>
import math

import jax
import jax.numpy as jnp
from jax.experimental import pallas as pl
from jax.experimental.pallas import tpu as pltpu

# ---------------- synthetic model configuration ----------------
B, S, H = 2, 8, 32          # batch, seq, hidden (= embed_dim = feat_dim)
NUM_HEADS = 2
HEAD_DIM = H // NUM_HEADS
INTER = 4 * H               # FFN intermediate size
VOCAB = 50
LN_EPS = 1e-12              # BERT LayerNorm eps
NORM_EPS = 1e-12            # F.normalize eps

# weight-slab row offsets: each weight stored (in, out), zero-padded to 128 lanes
R_WQKV = 0                  # (H, 3H)   rows   0: 32
R_WO = H                    # (H, H)    rows  32: 64
R_W1 = 2 * H                # (H, I)    rows  64: 96
R_W2 = 3 * H                # (I, H)    rows  96:224
R_WHEAD = 3 * H + INTER     # (H, H)    rows 224:256
W_SLAB_ROWS = 3 * H + INTER + H
W_SLAB_LANES = 128

# vector-slab row indices: each (1, feat), zero-padded to 128 lanes
V_EMB_LN_G, V_EMB_LN_B = 0, 1
V_BQKV = 2
V_BO = 3
V_LN1_G, V_LN1_B = 4, 5
V_B1 = 6
V_B2 = 7
V_LN2_G, V_LN2_B = 8, 9
V_BHEAD = 10
V_SLAB_ROWS = 16


def _layer_norm(x, gamma, beta):
    mu = jnp.mean(x, axis=-1, keepdims=True)
    var = jnp.mean((x - mu) ** 2, axis=-1, keepdims=True)
    return (x - mu) * jax.lax.rsqrt(var + LN_EPS) * gamma + beta


# ---------------- fused Pallas kernel ----------------
def supcon_fused_kernel(x_ref, w_ref, vec_ref, out_ref):
    """Embedding-LN -> BERT layer -> CLS -> normalize -> SupCon head.

    x_ref   : (B*S, H)              pre-LayerNorm embeddings
    w_ref   : (256, 128) f32        packed weight slab (see R_* offsets)
    vec_ref : (16, 128)  f32        packed bias / LayerNorm slab (see V_* rows)
    out_ref : (2B, H)               rows [0,B)=embeddings, rows [B,2B)=head out
    """
    # --- BERT embedding LayerNorm (token gather happens in XLA glue) ---
    x = _layer_norm(x_ref[...],
                    vec_ref[V_EMB_LN_G:V_EMB_LN_G + 1, :H],
                    vec_ref[V_EMB_LN_B:V_EMB_LN_B + 1, :H])            # (B*S, H)

    # --- fused QKV projection (q columns pre-scaled by 1/sqrt(head_dim)) ---
    qkv = (jnp.dot(x, w_ref[R_WQKV:R_WQKV + H, :3 * H],
                   preferred_element_type=jnp.float32)
           + vec_ref[V_BQKV:V_BQKV + 1, :3 * H])                        # (B*S, 3H)
    qkv3 = qkv.reshape(B, S, 3 * H)        # free major-dim split (16 -> 2x8 rows)

    # --- multi-head self-attention, batched over B; static loop over heads ---
    # attention_mask is all-ones in this synthetic setup -> additive mask == 0.
    # TODO(synk): padded attention_mask handling not implemented.
    cls_ctx = []
    for h in range(NUM_HEADS):                                 # static, 2 heads
        c0 = h * HEAD_DIM
        qh = qkv3[:, :, c0:c0 + HEAD_DIM]                      # (B, S, hd)
        kh = qkv3[:, :, H + c0:H + c0 + HEAD_DIM]
        vh = qkv3[:, :, 2 * H + c0:2 * H + c0 + HEAD_DIM]
        s = jnp.einsum('bqd,bkd->bqk', qh, kh,
                       preferred_element_type=jnp.float32)     # (B, S, S)
        s = s - jnp.max(s, axis=-1, keepdims=True)
        p = jnp.exp(s)
        p = p / jnp.sum(p, axis=-1, keepdims=True)             # exact softmax
        ctx_h = jnp.einsum('bqk,bkd->bqd', p, vh,
                           preferred_element_type=jnp.float32)  # (B, S, hd)
        cls_ctx.append(ctx_h[:, 0, :])          # only the CLS query row survives
    ctx_cls = jnp.concatenate(cls_ctx, axis=-1)                # (B, H)

    # --- everything past the attention context is position-wise and only the
    # CLS position is consumed by SupConModel.forward, so only B rows continue
    # through wo / LN1 / FFN / LN2 (exact, not an approximation). ---
    x_cls = x.reshape(B, S, H)[:, 0, :]                        # (B, H)
    attn = (jnp.dot(ctx_cls, w_ref[R_WO:R_WO + H, :H],
                    preferred_element_type=jnp.float32)
            + vec_ref[V_BO:V_BO + 1, :H])
    h1 = _layer_norm(x_cls + attn,
                     vec_ref[V_LN1_G:V_LN1_G + 1, :H],
                     vec_ref[V_LN1_B:V_LN1_B + 1, :H])          # (B, H)

    # --- FFN on CLS rows only ---
    ff = (jnp.dot(h1, w_ref[R_W1:R_W1 + H, :INTER],
                  preferred_element_type=jnp.float32)
          + vec_ref[V_B1:V_B1 + 1, :INTER])                     # (B, INTER)
    # TODO(synk): HF BERT uses exact erf GELU; tanh approximation used here.
    ff = jax.nn.gelu(ff, approximate=True)
    ff = (jnp.dot(ff, w_ref[R_W2:R_W2 + INTER, :H],
                  preferred_element_type=jnp.float32)
          + vec_ref[V_B2:V_B2 + 1, :H])                         # (B, H)
    cls = _layer_norm(h1 + ff,
                      vec_ref[V_LN2_G:V_LN2_G + 1, :H],
                      vec_ref[V_LN2_B:V_LN2_B + 1, :H])          # (B, H)

    # --- SupCon tail ---
    # self.embeddings = F.normalize(cls_output); dropout is identity in eval,
    # so norm_output == embeddings and the normalize is computed once.
    # TODO(synk): training-mode dropout (mask + 1/(1-p) rescale) not applied.
    sumsq = jnp.sum(cls * cls, axis=1, keepdims=True)
    inv_norm = jax.lax.rsqrt(jnp.maximum(sumsq, NORM_EPS * NORM_EPS))
    emb = cls * inv_norm                                        # (B, H)
    head = (jnp.dot(emb, w_ref[R_WHEAD:R_WHEAD + H, :H],
                    preferred_element_type=jnp.float32)
            + vec_ref[V_BHEAD:V_BHEAD + 1, :H])                  # (B, H)

    # sublane-dense store (no lane-offset concat): [embeddings; head_output]
    out_ref[...] = jnp.concatenate([emb, head], axis=0)         # (2B, H)


# ---------------- wrapper ----------------
def run_supcon_fused(x_flat, w_slab, vec_slab):
    """x_flat: (B*S, H) pre-LayerNorm embeddings. Returns (embeddings, head)."""
    vmem_spec = pl.BlockSpec(memory_space=pltpu.MemorySpace.VMEM)
    out = pl.pallas_call(
        supcon_fused_kernel,
        out_shape=jax.ShapeDtypeStruct((2 * B, H), jnp.float32),
        in_specs=[vmem_spec, vmem_spec, vmem_spec],   # 3 inputs, 3 DMAs, no grid
        out_specs=vmem_spec,
    )(x_flat, w_slab, vec_slab)
    return out[:B], out[B:]


# ---------------- deterministic parameter init ----------------
def init_params(key):
    keys = jax.random.split(key, 16)
    std = 0.02

    def w(k, shape):
        return jax.random.normal(k, shape, jnp.float32) * std

    params = {
        # embedding tables
        "word_emb": w(keys[0], (VOCAB, H)),
        "pos_emb": w(keys[1], (S, H)),
        "type_emb": w(keys[2], (2, H)),
        "emb_ln_g": jnp.ones((H,), jnp.float32),
        "emb_ln_b": jnp.zeros((H,), jnp.float32),
        # attention (stored torch-style (out, in); transposed before packing)
        "wq": w(keys[3], (H, H)), "bq": jnp.zeros((H,), jnp.float32),
        "wk": w(keys[4], (H, H)), "bk": jnp.zeros((H,), jnp.float32),
        "wv": w(keys[5], (H, H)), "bv": jnp.zeros((H,), jnp.float32),
        "wo": w(keys[6], (H, H)), "bo": jnp.zeros((H,), jnp.float32),
        "ln1_g": jnp.ones((H,), jnp.float32),
        "ln1_b": jnp.zeros((H,), jnp.float32),
        # FFN
        "w1": w(keys[7], (INTER, H)), "b1": jnp.zeros((INTER,), jnp.float32),
        "w2": w(keys[8], (H, INTER)), "b2": jnp.zeros((H,), jnp.float32),
        "ln2_g": jnp.ones((H,), jnp.float32),
        "ln2_b": jnp.zeros((H,), jnp.float32),
        # SupCon head: nn.Linear(feat_dim, feat_dim)
        "w_head": w(keys[9], (H, H)),
        "b_head": jnp.zeros((H,), jnp.float32),
    }
    return params


# ---------------- parameter packing (2 VMEM slabs) ----------------
def _pad_lanes(a, lanes=W_SLAB_LANES):
    return jnp.pad(a, ((0, 0), (0, lanes - a.shape[-1])))


def _vec_row(v, lanes=W_SLAB_LANES):
    v = v.reshape(1, -1)
    return jnp.pad(v, ((0, 0), (0, lanes - v.shape[-1])))


def pack_param_slabs(params):
    scale = 1.0 / math.sqrt(HEAD_DIM)
    # fused QKV weight/bias, 1/sqrt(head_dim) baked into the q columns
    wqkv = jnp.concatenate(
        [params["wq"].T * scale, params["wk"].T, params["wv"].T], axis=1)   # (H, 3H)
    bqkv = jnp.concatenate(
        [params["bq"] * scale, params["bk"], params["bv"]])                 # (3H,)

    w_slab = jnp.concatenate([
        _pad_lanes(wqkv),                 # rows   0: 32
        _pad_lanes(params["wo"].T),       # rows  32: 64
        _pad_lanes(params["w1"].T),       # rows  64: 96
        _pad_lanes(params["w2"].T),       # rows  96:224
        _pad_lanes(params["w_head"].T),   # rows 224:256
    ], axis=0)                            # (256, 128) f32

    vec_slab = jnp.concatenate([
        _vec_row(params["emb_ln_g"]),     # 0
        _vec_row(params["emb_ln_b"]),     # 1
        _vec_row(bqkv),                   # 2
        _vec_row(params["bo"]),           # 3
        _vec_row(params["ln1_g"]),        # 4
        _vec_row(params["ln1_b"]),        # 5
        _vec_row(params["b1"]),           # 6
        _vec_row(params["b2"]),           # 7
        _vec_row(params["ln2_g"]),        # 8
        _vec_row(params["ln2_b"]),        # 9
        _vec_row(params["b_head"]),       # 10
    ], axis=0)
    vec_slab = jnp.pad(vec_slab, ((0, V_SLAB_ROWS - vec_slab.shape[0]), (0, 0)))

    # TODO(synk): cast slabs to bf16 (keep f32 elementwise/accumulate) when
    #             scaling to real BERT dims on v6e/v7x.
    return w_slab, vec_slab


@jax.jit
def supcon_forward(params, input_ids, attention_mask):
    """Mirrors SupConModel.forward; returns (head_output, embeddings)."""
    del attention_mask  # all-ones in this synthetic setup (no padding)

    # --- BERT embeddings (glue: gather + adds; LN happens inside the kernel) ---
    # TODO(synk): token_type_ids assumed all zero.
    emb = (params["word_emb"][input_ids]
           + params["pos_emb"][None, :, :]
           + params["type_emb"][0][None, None, :])
    x_flat = emb.reshape(B * S, H).astype(jnp.float32)

    w_slab, vec_slab = pack_param_slabs(params)
    embeddings, head_out = run_supcon_fused(x_flat, w_slab, vec_slab)
    return head_out, embeddings


if __name__ == "__main__":
    key = jax.random.PRNGKey(0)
    pkey, ikey = jax.random.split(key)

    params = init_params(pkey)
    input_ids = jax.random.randint(ikey, (B, S), 0, VOCAB, dtype=jnp.int32)
    attention_mask = jnp.ones((B, S), jnp.int32)

    head_out, embeddings = supcon_forward(params, input_ids, attention_mask)
    head_out = jax.block_until_ready(head_out)
    embeddings = jax.block_until_ready(embeddings)

    assert head_out.shape == (B, H) and embeddings.shape == (B, H)
    assert bool(jnp.all(jnp.isfinite(head_out)))
    assert bool(jnp.all(jnp.isfinite(embeddings)))
    # embeddings must be unit-norm rows (F.normalize of CLS output)
    norms = jnp.sqrt(jnp.sum(embeddings * embeddings, axis=1))
    assert bool(jnp.all(jnp.abs(norms - 1.0) < 1e-3))
    print("KERNEL_OK")
</pallas_src>

<mosaic_0001>
module attributes {stable_mosaic.version = 11 : i64} {
  func.func @supcon_fused_kernel(%arg0: memref<16x32xf32, #tpu.memory_space<vmem>>, %arg1: memref<256x128xf32, #tpu.memory_space<vmem>>, %arg2: memref<16x128xf32, #tpu.memory_space<vmem>>, %arg3: memref<4x32xf32, #tpu.memory_space<vmem>>) attributes {dimension_semantics = [], scalar_prefetch = 0 : i64, scratch_operands = 0 : i64, tpu.core_type = #tpu.core_type<tc>} {
    %c0 = arith.constant 0 : index
    %c0_0 = arith.constant 0 : index
    %0 = vector.load %arg0[%c0, %c0_0] : memref<16x32xf32, #tpu.memory_space<vmem>>, vector<16x32xf32>
    %c0_1 = arith.constant 0 : index
    %c0_2 = arith.constant 0 : index
    %1 = vector.load %arg2[%c0_1, %c0_2] : memref<16x128xf32, #tpu.memory_space<vmem>>, vector<1x32xf32>
    %c1 = arith.constant 1 : index
    %c0_3 = arith.constant 0 : index
    %2 = vector.load %arg2[%c1, %c0_3] : memref<16x128xf32, #tpu.memory_space<vmem>>, vector<1x32xf32>
    %cst = arith.constant dense<0.000000e+00> : vector<16xf32>
    %3 = vector.multi_reduction <add>, %0, %cst [1] : vector<16x32xf32> to vector<16xf32>
    %4 = vector.shape_cast %3 : vector<16xf32> to vector<16x1xf32>
    %cst_4 = arith.constant 3.200000e+01 : f32
    %5 = vector.broadcast %cst_4 : f32 to vector<16x1xf32>
    %6 = arith.divf %4, %5 : vector<16x1xf32>
    %7 = vector.broadcast %6 : vector<16x1xf32> to vector<16x32xf32>
    %8 = arith.subf %0, %7 : vector<16x32xf32>
    %9 = arith.mulf %8, %8 : vector<16x32xf32>
    %cst_5 = arith.constant dense<0.000000e+00> : vector<16xf32>
    %10 = vector.multi_reduction <add>, %9, %cst_5 [1] : vector<16x32xf32> to vector<16xf32>
    %11 = vector.shape_cast %10 : vector<16xf32> to vector<16x1xf32>
    %cst_6 = arith.constant 3.200000e+01 : f32
    %12 = vector.broadcast %cst_6 : f32 to vector<16x1xf32>
    %13 = arith.divf %11, %12 : vector<16x1xf32>
    %14 = vector.broadcast %6 : vector<16x1xf32> to vector<16x32xf32>
    %15 = arith.subf %0, %14 : vector<16x32xf32>
    %cst_7 = arith.constant 9.99999996E-13 : f32
    %16 = vector.broadcast %cst_7 : f32 to vector<16x1xf32>
    %17 = arith.addf %13, %16 : vector<16x1xf32>
    %18 = math.rsqrt %17 : vector<16x1xf32>
    %19 = vector.broadcast %18 : vector<16x1xf32> to vector<16x32xf32>
    %20 = arith.mulf %15, %19 : vector<16x32xf32>
    %21 = vector.broadcast %1 : vector<1x32xf32> to vector<16x32xf32>
    %22 = arith.mulf %20, %21 : vector<16x32xf32>
    %23 = vector.broadcast %2 : vector<1x32xf32> to vector<16x32xf32>
    %24 = arith.addf %22, %23 : vector<16x32xf32>
    %c0_8 = arith.constant 0 : index
    %c0_9 = arith.constant 0 : index
    %25 = vector.load %arg1[%c0_8, %c0_9] : memref<256x128xf32, #tpu.memory_space<vmem>>, vector<32x96xf32>
    %cst_10 = arith.constant dense<0.000000e+00> : vector<16x96xf32>
    %26 = tpu.matmul %24, %25, %cst_10 {dimension_numbers = #tpu.dot_dimension_numbers<[1], [0], [0], [1], [0, 0, 1, 1], [], []>} : vector<16x32xf32>, vector<32x96xf32>, vector<16x96xf32> -> vector<16x96xf32>
    %c2 = arith.constant 2 : index
    %c0_11 = arith.constant 0 : index
    %27 = vector.load %arg2[%c2, %c0_11] : memref<16x128xf32, #tpu.memory_space<vmem>>, vector<1x96xf32>
    %28 = vector.broadcast %27 : vector<1x96xf32> to vector<16x96xf32>
    %29 = arith.addf %26, %28 : vector<16x96xf32>
    %30 = vector.shape_cast %29 : vector<16x96xf32> to vector<2x8x96xf32>
    %31 = vector.extract_strided_slice %30 {offsets = [0, 0, 0], sizes = [2, 8, 16], strides = [1, 1, 1]} : vector<2x8x96xf32> to vector<2x8x16xf32>
    %32 = vector.extract_strided_slice %30 {offsets = [0, 0, 32], sizes = [2, 8, 16], strides = [1, 1, 1]} : vector<2x8x96xf32> to vector<2x8x16xf32>
    %33 = vector.extract_strided_slice %30 {offsets = [0, 0, 64], sizes = [2, 8, 16], strides = [1, 1, 1]} : vector<2x8x96xf32> to vector<2x8x16xf32>
    "tpu.trace_start"() <{level = 10 : i32, message = "bqd,bkd->bqk"}> : () -> ()
    %cst_12 = arith.constant dense<0.000000e+00> : vector<2x8x8xf32>
    %34 = tpu.matmul %31, %32, %cst_12 {dimension_numbers = #tpu.dot_dimension_numbers<[2], [2], [1], [1], [0, 0, 0, 1, 1, 1], [0], [0]>} : vector<2x8x16xf32>, vector<2x8x16xf32>, vector<2x8x8xf32> -> vector<2x8x8xf32>
    "tpu.trace_stop"() : () -> ()
    %cst_13 = arith.constant dense<0xFF800000> : vector<2x8xf32>
    %35 = vector.multi_reduction <maximumf>, %34, %cst_13 [2] : vector<2x8x8xf32> to vector<2x8xf32>
    %36 = vector.shape_cast %35 : vector<2x8xf32> to vector<2x8x1xf32>
    %37 = vector.broadcast %36 : vector<2x8x1xf32> to vector<2x8x8xf32>
    %38 = arith.subf %34, %37 : vector<2x8x8xf32>
    %39 = math.exp %38 : vector<2x8x8xf32>
    %cst_14 = arith.constant dense<0.000000e+00> : vector<2x8xf32>
    %40 = vector.multi_reduction <add>, %39, %cst_14 [2] : vector<2x8x8xf32> to vector<2x8xf32>
    %41 = vector.shape_cast %40 : vector<2x8xf32> to vector<2x8x1xf32>
    %42 = vector.broadcast %41 : vector<2x8x1xf32> to vector<2x8x8xf32>
    %43 = arith.divf %39, %42 : vector<2x8x8xf32>
    "tpu.trace_start"() <{level = 10 : i32, message = "bqk,bkd->bqd"}> : () -> ()
    %cst_15 = arith.constant dense<0.000000e+00> : vector<2x8x16xf32>
    %44 = tpu.matmul %43, %33, %cst_15 {dimension_numbers = #tpu.dot_dimension_numbers<[2], [1], [1], [2], [0, 0, 0, 1, 1, 2], [0], [0]>} : vector<2x8x8xf32>, vector<2x8x16xf32>, vector<2x8x16xf32> -> vector<2x8x16xf32>
    "tpu.trace_stop"() : () -> ()
    %45 = vector.extract_strided_slice %44 {offsets = [0, 0, 0], sizes = [2, 1, 16], strides = [1, 1, 1]} : vector<2x8x16xf32> to vector<2x1x16xf32>
    %46 = vector.shape_cast %45 : vector<2x1x16xf32> to vector<2x16xf32>
    %47 = vector.extract_strided_slice %30 {offsets = [0, 0, 16], sizes = [2, 8, 16], strides = [1, 1, 1]} : vector<2x8x96xf32> to vector<2x8x16xf32>
    %48 = vector.extract_strided_slice %30 {offsets = [0, 0, 48], sizes = [2, 8, 16], strides = [1, 1, 1]} : vector<2x8x96xf32> to vector<2x8x16xf32>
    %49 = vector.extract_strided_slice %30 {offsets = [0, 0, 80], sizes = [2, 8, 16], strides = [1, 1, 1]} : vector<2x8x96xf32> to vector<2x8x16xf32>
    "tpu.trace_start"() <{level = 10 : i32, message = "bqd,bkd->bqk"}> : () -> ()
    %cst_16 = arith.constant dense<0.000000e+00> : vector<2x8x8xf32>
    %50 = tpu.matmul %47, %48, %cst_16 {dimension_numbers = #tpu.dot_dimension_numbers<[2], [2], [1], [1], [0, 0, 0, 1, 1, 1], [0], [0]>} : vector<2x8x16xf32>, vector<2x8x16xf32>, vector<2x8x8xf32> -> vector<2x8x8xf32>
    "tpu.trace_stop"() : () -> ()
    %cst_17 = arith.constant dense<0xFF800000> : vector<2x8xf32>
    %51 = vector.multi_reduction <maximumf>, %50, %cst_17 [2] : vector<2x8x8xf32> to vector<2x8xf32>
    %52 = vector.shape_cast %51 : vector<2x8xf32> to vector<2x8x1xf32>
    %53 = vector.broadcast %52 : vector<2x8x1xf32> to vector<2x8x8xf32>
    %54 = arith.subf %50, %53 : vector<2x8x8xf32>
    %55 = math.exp %54 : vector<2x8x8xf32>
    %cst_18 = arith.constant dense<0.000000e+00> : vector<2x8xf32>
    %56 = vector.multi_reduction <add>, %55, %cst_18 [2] : vector<2x8x8xf32> to vector<2x8xf32>
    %57 = vector.shape_cast %56 : vector<2x8xf32> to vector<2x8x1xf32>
    %58 = vector.broadcast %57 : vector<2x8x1xf32> to vector<2x8x8xf32>
    %59 = arith.divf %55, %58 : vector<2x8x8xf32>
    "tpu.trace_start"() <{level = 10 : i32, message = "bqk,bkd->bqd"}> : () -> ()
    %cst_19 = arith.constant dense<0.000000e+00> : vector<2x8x16xf32>
    %60 = tpu.matmul %59, %49, %cst_19 {dimension_numbers = #tpu.dot_dimension_numbers<[2], [1], [1], [2], [0, 0, 0, 1, 1, 2], [0], [0]>} : vector<2x8x8xf32>, vector<2x8x16xf32>, vector<2x8x16xf32> -> vector<2x8x16xf32>
    "tpu.trace_stop"() : () -> ()
    %61 = vector.extract_strided_slice %60 {offsets = [0, 0, 0], sizes = [2, 1, 16], strides = [1, 1, 1]} : vector<2x8x16xf32> to vector<2x1x16xf32>
    %62 = vector.shape_cast %61 : vector<2x1x16xf32> to vector<2x16xf32>
    %63 = tpu.concatenate %46, %62 in 1 : vector<2x16xf32>, vector<2x16xf32> -> vector<2x32xf32>
    %64 = vector.shape_cast %24 : vector<16x32xf32> to vector<2x8x32xf32>
    %65 = vector.extract_strided_slice %64 {offsets = [0, 0, 0], sizes = [2, 1, 32], strides = [1, 1, 1]} : vector<2x8x32xf32> to vector<2x1x32xf32>
    %66 = vector.shape_cast %65 : vector<2x1x32xf32> to vector<2x32xf32>
    %c32 = arith.constant 32 : index
    %c0_20 = arith.constant 0 : index
    %67 = vector.load %arg1[%c32, %c0_20] : memref<256x128xf32, #tpu.memory_space<vmem>>, vector<32x32xf32>
    %cst_21 = arith.constant dense<0.000000e+00> : vector<2x32xf32>
    %68 = tpu.matmul %63, %67, %cst_21 {dimension_numbers = #tpu.dot_dimension_numbers<[1], [0], [0], [1], [0, 0, 1, 1], [], []>} : vector<2x32xf32>, vector<32x32xf32>, vector<2x32xf32> -> vector<2x32xf32>
    %c3 = arith.constant 3 : index
    %c0_22 = arith.constant 0 : index
    %69 = vector.load %arg2[%c3, %c0_22] : memref<16x128xf32, #tpu.memory_space<vmem>>, vector<1x32xf32>
    %70 = vector.broadcast %69 : vector<1x32xf32> to vector<2x32xf32>
    %71 = arith.addf %68, %70 : vector<2x32xf32>
    %72 = arith.addf %66, %71 : vector<2x32xf32>
    %c4 = arith.constant 4 : index
    %c0_23 = arith.constant 0 : index
    %73 = vector.load %arg2[%c4, %c0_23] : memref<16x128xf32, #tpu.memory_space<vmem>>, vector<1x32xf32>
    %c5 = arith.constant 5 : index
    %c0_24 = arith.constant 0 : index
    %74 = vector.load %arg2[%c5, %c0_24] : memref<16x128xf32, #tpu.memory_space<vmem>>, vector<1x32xf32>
    %cst_25 = arith.constant dense<0.000000e+00> : vector<2xf32>
    %75 = vector.multi_reduction <add>, %72, %cst_25 [1] : vector<2x32xf32> to vector<2xf32>
    %76 = vector.shape_cast %75 : vector<2xf32> to vector<2x1xf32>
    %cst_26 = arith.constant 3.200000e+01 : f32
    %77 = vector.broadcast %cst_26 : f32 to vector<2x1xf32>
    %78 = arith.divf %76, %77 : vector<2x1xf32>
    %79 = vector.broadcast %78 : vector<2x1xf32> to vector<2x32xf32>
    %80 = arith.subf %72, %79 : vector<2x32xf32>
    %81 = arith.mulf %80, %80 : vector<2x32xf32>
    %cst_27 = arith.constant dense<0.000000e+00> : vector<2xf32>
    %82 = vector.multi_reduction <add>, %81, %cst_27 [1] : vector<2x32xf32> to vector<2xf32>
    %83 = vector.shape_cast %82 : vector<2xf32> to vector<2x1xf32>
    %cst_28 = arith.constant 3.200000e+01 : f32
    %84 = vector.broadcast %cst_28 : f32 to vector<2x1xf32>
    %85 = arith.divf %83, %84 : vector<2x1xf32>
    %86 = vector.broadcast %78 : vector<2x1xf32> to vector<2x32xf32>
    %87 = arith.subf %72, %86 : vector<2x32xf32>
    %cst_29 = arith.constant 9.99999996E-13 : f32
    %88 = vector.broadcast %cst_29 : f32 to vector<2x1xf32>
    %89 = arith.addf %85, %88 : vector<2x1xf32>
    %90 = math.rsqrt %89 : vector<2x1xf32>
    %91 = vector.broadcast %90 : vector<2x1xf32> to vector<2x32xf32>
    %92 = arith.mulf %87, %91 : vector<2x32xf32>
    %93 = vector.broadcast %73 : vector<1x32xf32> to vector<2x32xf32>
    %94 = arith.mulf %92, %93 : vector<2x32xf32>
    %95 = vector.broadcast %74 : vector<1x32xf32> to vector<2x32xf32>
    %96 = arith.addf %94, %95 : vector<2x32xf32>
    %c64 = arith.constant 64 : index
    %c0_30 = arith.constant 0 : index
    %97 = vector.load %arg1[%c64, %c0_30] : memref<256x128xf32, #tpu.memory_space<vmem>>, vector<32x128xf32>
    %cst_31 = arith.constant dense<0.000000e+00> : vector<2x128xf32>
    %98 = tpu.matmul %96, %97, %cst_31 {dimension_numbers = #tpu.dot_dimension_numbers<[1], [0], [0], [1], [0, 0, 1, 1], [], []>} : vector<2x32xf32>, vector<32x128xf32>, vector<2x128xf32> -> vector<2x128xf32>
    %c6 = arith.constant 6 : index
    %c0_32 = arith.constant 0 : index
    %99 = vector.load %arg2[%c6, %c0_32] : memref<16x128xf32, #tpu.memory_space<vmem>>, vector<1x128xf32>
    %100 = vector.broadcast %99 : vector<1x128xf32> to vector<2x128xf32>
    %101 = arith.addf %98, %100 : vector<2x128xf32>
    %102 = arith.mulf %101, %101 : vector<2x128xf32>
    %103 = arith.mulf %101, %102 : vector<2x128xf32>
    %cst_33 = arith.constant 4.471500e-02 : f32
    %104 = vector.broadcast %cst_33 : f32 to vector<2x128xf32>
    %105 = arith.mulf %104, %103 : vector<2x128xf32>
    %106 = arith.addf %101, %105 : vector<2x128xf32>
    %cst_34 = arith.constant 0.797884583 : f32
    %107 = vector.broadcast %cst_34 : f32 to vector<2x128xf32>
    %108 = arith.mulf %107, %106 : vector<2x128xf32>
    %109 = math.tanh %108 : vector<2x128xf32>
    %cst_35 = arith.constant 1.000000e+00 : f32
    %110 = vector.broadcast %cst_35 : f32 to vector<2x128xf32>
    %111 = arith.addf %110, %109 : vector<2x128xf32>
    %cst_36 = arith.constant 5.000000e-01 : f32
    %112 = vector.broadcast %cst_36 : f32 to vector<2x128xf32>
    %113 = arith.mulf %112, %111 : vector<2x128xf32>
    %114 = arith.mulf %101, %113 : vector<2x128xf32>
    %c96 = arith.constant 96 : index
    %c0_37 = arith.constant 0 : index
    %115 = vector.load %arg1[%c96, %c0_37] : memref<256x128xf32, #tpu.memory_space<vmem>>, vector<128x32xf32>
    %cst_38 = arith.constant dense<0.000000e+00> : vector<2x32xf32>
    %116 = tpu.matmul %114, %115, %cst_38 {dimension_numbers = #tpu.dot_dimension_numbers<[1], [0], [0], [1], [0, 0, 1, 1], [], []>} : vector<2x128xf32>, vector<128x32xf32>, vector<2x32xf32> -> vector<2x32xf32>
    %c7 = arith.constant 7 : index
    %c0_39 = arith.constant 0 : index
    %117 = vector.load %arg2[%c7, %c0_39] : memref<16x128xf32, #tpu.memory_space<vmem>>, vector<1x32xf32>
    %118 = vector.broadcast %117 : vector<1x32xf32> to vector<2x32xf32>
    %119 = arith.addf %116, %118 : vector<2x32xf32>
    %120 = arith.addf %96, %119 : vector<2x32xf32>
    %c8 = arith.constant 8 : index
    %c0_40 = arith.constant 0 : index
    %121 = vector.load %arg2[%c8, %c0_40] : memref<16x128xf32, #tpu.memory_space<vmem>>, vector<1x32xf32>
    %c9 = arith.constant 9 : index
    %c0_41 = arith.constant 0 : index
    %122 = vector.load %arg2[%c9, %c0_41] : memref<16x128xf32, #tpu.memory_space<vmem>>, vector<1x32xf32>
    %cst_42 = arith.constant dense<0.000000e+00> : vector<2xf32>
    %123 = vector.multi_reduction <add>, %120, %cst_42 [1] : vector<2x32xf32> to vector<2xf32>
    %124 = vector.shape_cast %123 : vector<2xf32> to vector<2x1xf32>
    %cst_43 = arith.constant 3.200000e+01 : f32
    %125 = vector.broadcast %cst_43 : f32 to vector<2x1xf32>
    %126 = arith.divf %124, %125 : vector<2x1xf32>
    %127 = vector.broadcast %126 : vector<2x1xf32> to vector<2x32xf32>
    %128 = arith.subf %120, %127 : vector<2x32xf32>
    %129 = arith.mulf %128, %128 : vector<2x32xf32>
    %cst_44 = arith.constant dense<0.000000e+00> : vector<2xf32>
    %130 = vector.multi_reduction <add>, %129, %cst_44 [1] : vector<2x32xf32> to vector<2xf32>
    %131 = vector.shape_cast %130 : vector<2xf32> to vector<2x1xf32>
    %cst_45 = arith.constant 3.200000e+01 : f32
    %132 = vector.broadcast %cst_45 : f32 to vector<2x1xf32>
    %133 = arith.divf %131, %132 : vector<2x1xf32>
    %134 = vector.broadcast %126 : vector<2x1xf32> to vector<2x32xf32>
    %135 = arith.subf %120, %134 : vector<2x32xf32>
    %cst_46 = arith.constant 9.99999996E-13 : f32
    %136 = vector.broadcast %cst_46 : f32 to vector<2x1xf32>
    %137 = arith.addf %133, %136 : vector<2x1xf32>
    %138 = math.rsqrt %137 : vector<2x1xf32>
    %139 = vector.broadcast %138 : vector<2x1xf32> to vector<2x32xf32>
    %140 = arith.mulf %135, %139 : vector<2x32xf32>
    %141 = vector.broadcast %121 : vector<1x32xf32> to vector<2x32xf32>
    %142 = arith.mulf %140, %141 : vector<2x32xf32>
    %143 = vector.broadcast %122 : vector<1x32xf32> to vector<2x32xf32>
    %144 = arith.addf %142, %143 : vector<2x32xf32>
    %145 = arith.mulf %144, %144 : vector<2x32xf32>
    %cst_47 = arith.constant dense<0.000000e+00> : vector<2xf32>
    %146 = vector.multi_reduction <add>, %145, %cst_47 [1] : vector<2x32xf32> to vector<2xf32>
    %147 = vector.shape_cast %146 : vector<2xf32> to vector<2x1xf32>
    %cst_48 = arith.constant 1.000000e-24 : f32
    %148 = vector.broadcast %cst_48 : f32 to vector<2x1xf32>
    %149 = arith.maximumf %147, %148 : vector<2x1xf32>
    %150 = math.rsqrt %149 : vector<2x1xf32>
    %151 = vector.broadcast %150 : vector<2x1xf32> to vector<2x32xf32>
    %152 = arith.mulf %144, %151 : vector<2x32xf32>
    %c224 = arith.constant 224 : index
    %c0_49 = arith.constant 0 : index
    %153 = vector.load %arg1[%c224, %c0_49] : memref<256x128xf32, #tpu.memory_space<vmem>>, vector<32x32xf32>
    %cst_50 = arith.constant dense<0.000000e+00> : vector<2x32xf32>
    %154 = tpu.matmul %152, %153, %cst_50 {dimension_numbers = #tpu.dot_dimension_numbers<[1], [0], [0], [1], [0, 0, 1, 1], [], []>} : vector<2x32xf32>, vector<32x32xf32>, vector<2x32xf32> -> vector<2x32xf32>
    %c10 = arith.constant 10 : index
    %c0_51 = arith.constant 0 : index
    %155 = vector.load %arg2[%c10, %c0_51] : memref<16x128xf32, #tpu.memory_space<vmem>>, vector<1x32xf32>
    %156 = vector.broadcast %155 : vector<1x32xf32> to vector<2x32xf32>
    %157 = arith.addf %154, %156 : vector<2x32xf32>
    %158 = tpu.concatenate %152, %157 in 0 : vector<2x32xf32>, vector<2x32xf32> -> vector<4x32xf32>
    %c0_52 = arith.constant 0 : index
    %c0_53 = arith.constant 0 : index
    %159 = vector.load %arg3[%c0_52, %c0_53] : memref<4x32xf32, #tpu.memory_space<vmem>>, vector<4x32xf32>
    tpu.vector_store %arg3[%c0_52, %c0_53], %158 {strides = array<i32>} : memref<4x32xf32, #tpu.memory_space<vmem>>, vector<4x32xf32>,
    return
  }
}

</mosaic_0001>

<llo_original>
// kernel: supcon_forward.1
$region0: #{supcon_forward.1}
  #allocation0 [shape = 'u32[]', space=smem, size = 0x4, offset = 0x4, fixed_abs, tag = 'smem constant byte address 0x4 - core index']
  #allocation1 [shape = 'u32[144,128]{1,0:T(1,128)}', space=vmem, size = 0x12000, scoped, tag = 'internal scratch']
  %s0 = inlined_call_operand.vmem [shape: f32[16,32], index: 0, kind: input, shape index: {}]
  %s1 = inlined_call_operand.vmem [shape: f32[256,128], index: 1, kind: input, shape index: {}]
  %s2 = inlined_call_operand.vmem [shape: f32[16,128], index: 2, kind: input, shape index: {}]
  %s3 = inlined_call_operand.vmem [shape: f32[4,32], index: 3, kind: output, shape index: {}]
  %s4 = sld [smem:[#allocation0]]
  $region22: #{supcon_forward.1} parent=0
    _
  %s6 = ssub.s32 1, %s4
  %s7 = scalar_select 0, %s6, %s4
  // Predicated region
  $region2: #{supcon_forward.1} parent=0 // pred_check
    _
  $region3: #{supcon_forward.1} parent=0 // pred_check_branch
    %9 = sbr.rel (0) target = $region5
  $region4: #{supcon_forward.1} parent=0 // pred_region
    _
  $region5: #{supcon_forward.1} parent=0 // pred_fallthru
    _
  // Predicated region
  $region6: #{supcon_forward.1} parent=0 // pred_check
    _
  $region7: #{supcon_forward.1} parent=0 // pred_check_branch
    %11 = sbr.rel (0) target = $region9
  $region8: #{supcon_forward.1} parent=0 // pred_region
    _
  $region9: #{supcon_forward.1} parent=0 // pred_fallthru
    _
  // Predicated region
  $region10: #{supcon_forward.1} parent=0 // pred_check
    _
  $region11: #{supcon_forward.1} parent=0 // pred_check_branch
    %13 = sbr.rel (0) target = $region13
  $region12: #{supcon_forward.1} parent=0 // pred_region
    _
  $region13: #{supcon_forward.1} parent=0 // pred_fallthru
    _
  %v14 = vld [vmem:[%s0] sm:$0xff]
  %v15 = vld [vmem:[%s0 + $0x8] sm:$0xff]
  %v16 = vld [vmem:[%s2] sm:$0x1]
  %v17 = vld [vmem:[%s2 + $0x1] sm:$0x1]
  %vm18 = vcmask 261120
  %v19 = vsel %vm18, %v14, 0.0
  %20 = vadd.xlane.f32.xlu0 %v19
  %v21 = vpop.xlane.xlu0 %20
  %v22 = vsel %vm18, %v15, 0.0
  %23 = vadd.xlane.f32.xlu0 %v22
  %v24 = vpop.xlane.xlu0 %23
  %v25 = vrcp.pop 32.0
  %v26 = vmul.f32 %v21, %v25
  %v27 = vmul.f32 %v24, %v25
  %v28 = vsub.f32 %v14, %v26
  %v29 = vsub.f32 %v15, %v27
  %v30 = vmul.f32 %v28, %v28
  %v31 = vmul.f32 %v29, %v29
  %v32 = vsel %vm18, %v30, 0.0
  %33 = vadd.xlane.f32.xlu0 %v32
  %v34 = vpop.xlane.xlu0 %33
  %v35 = vsel %vm18, %v31, 0.0
  %36 = vadd.xlane.f32.xlu0 %v35
  %v37 = vpop.xlane.xlu0 %36
  %v38 = vmul.f32 %v34, %v25
  %v39 = vmul.f32 %v37, %v25
  %v40 = vadd.f32 %v38, 1e-12
  %v41 = vadd.f32 %v39, 1e-12
  %v42 = vrsqrt.pop %v40
  %v43 = vrsqrt.pop %v41
  %v44 = vmul.f32 %v28, %v42
  %v45 = vmul.f32 %v29, %v43
  %v46 = vlaneseq
  %v47 = vshrl.u32 %v46, 7
  %v48 = vsub.s32 0, %v47
  %v49 = vrot.slane %v16, %v48
  %v50 = vmul.f32 %v44, %v49
  %v51 = vmul.f32 %v45, %v49
  %v52 = vlaneseq
  %v53 = vshrl.u32 %v52, 7
  %v54 = vsub.s32 0, %v53
  %v55 = vrot.slane %v17, %v54
  %v56 = vadd.f32 %v50, %v55
  %v57 = vadd.f32 %v51, %v55
  %v58 = vld [vmem:[%s1] sm:$0xff]
  %v59 = vld [vmem:[%s1 + $0x8] sm:$0xff]
  %v60 = vld [vmem:[%s1 + $0x10] sm:$0xff]
  %v61 = vld [vmem:[%s1 + $0x18] sm:$0xff]
  %v62 = vld [vmem:[%s2 + $0x2] sm:$0x1]
  %v63 = vlaneseq
  %v64 = vshrl.u32 %v63, 7
  %v65 = vsub.s32 0, %v64
  %v66 = vrot.slane %v62, %v65
  %v68 = vsel %vm18, %v56, 0
  %v71 = vsel %vm18, %v57, 0
  %73 = vmatprep.subr.mxu0 0.0
  %74 = vmatpush1.msra.mxu0 0.0
  %75 = vmatprep.subr.mxu0 0.0
  %76 = vmatpush1.msra.mxu0 0.0
  %77 = vmatprep.subr.mxu0 0.0
  %78 = vmatpush1.msra.mxu0 0.0
  %79 = vmatprep.subr.mxu0 0.0
  %80 = vmatpush1.msra.mxu0 0.0
  %81 = vmatprep.subr.mxu0 0.0
  %82 = vmatpush1.msra.mxu0 0.0
  %83 = vmatprep.subr.mxu0 0.0
  %84 = vmatpush1.msra.mxu0 0.0
  %85 = vmatprep.subr.mxu0 0.0
  %86 = vmatpush1.msra.mxu0 0.0
  %87 = vmatprep.subr.mxu0 0.0
  %88 = vmatpush1.msra.mxu0 0.0
  %89 = vmatprep.subr.mxu0 0.0
  %90 = vmatpush1.msra.mxu0 0.0
  %91 = vmatprep.subr.mxu0 0.0
  %92 = vmatpush1.msra.mxu0 0.0
  %93 = vmatprep.subr.mxu0 0.0
  %94 = vmatpush1.msra.mxu0 0.0
  %95 = vmatprep.subr.mxu0 0.0
  %96 = vmatpush1.msra.mxu0 0.0
  %97 = vmatprep.subr.mxu0 0.0
  %98 = vmatpush1.msra.mxu0 %v61
  %99 = vmatprep.subr.mxu0 0.0
  %100 = vmatpush1.msra.mxu0 %v60
  %101 = vmatprep.subr.mxu0 0.0
  %102 = vmatpush1.msra.mxu0 %v59
  %103 = vmatprep.subr.mxu0 0.0
  %104 = vmatpush1.msra.mxu0 %v58
  %105 = vmatprep.subr.mxu0 0.0
  %106 = vmatpush2.msra.mxu0 0.0
  %107 = vmatprep.subr.mxu0 0.0
  %108 = vmatpush2.msra.mxu0 0.0
  %109 = vmatprep.subr.mxu0 0.0
  %110 = vmatpush2.msra.mxu0 0.0
  %111 = vmatprep.subr.mxu0 0.0
  %112 = vmatpush2.msra.mxu0 0.0
  %113 = vmatprep.subr.mxu0 0.0
  %114 = vmatpush2.msra.mxu0 0.0
  %115 = vmatprep.subr.mxu0 0.0
  %116 = vmatpush2.msra.mxu0 0.0
  %117 = vmatprep.subr.mxu0 0.0
  %118 = vmatpush2.msra.mxu0 0.0
  %119 = vmatprep.subr.mxu0 0.0
  %120 = vmatpush2.msra.mxu0 0.0
  %121 = vmatprep.subr.mxu0 0.0
  %122 = vmatpush2.msra.mxu0 0.0
  %123 = vmatprep.subr.mxu0 0.0
  %124 = vmatpush2.msra.mxu0 0.0
  %125 = vmatprep.subr.mxu0 0.0
  %126 = vmatpush2.msra.mxu0 0.0
  %127 = vmatprep.subr.mxu0 0.0
  %128 = vmatpush2.msra.mxu0 0.0
  %129 = vmatprep.subr.mxu0 0.0
  %130 = vmatpush2.msra.mxu0 0.0
  %131 = vmatprep.subr.mxu0 0.0
  %132 = vmatpush2.msra.mxu0 0.0
  %133 = vmatprep.subr.mxu0 0.0
  %134 = vmatpush2.msra.mxu0 0.0
  %135 = vmatprep.subr.mxu0 0.0
  %136 = vmatpush2.msra.mxu0 0.0
  %137 = vmatprep.mubr.f32.mxu0 0.0
  %138 = vmatmul.mubr.f32.gmra.mxu0 %v68
  %v139 = vpop.f32.mrf.mxu0
  %v140 = vadd.f32 %v66, %v139
  %v141 = vpop.f32.mrf.mxu0
  %142 = vmatprep.mubr.f32.mxu0 0.0
  %143 = vmatmul.mubr.f32.gmra.mxu0 %v71
  %v144 = vpop.f32.mrf.mxu0
  %v145 = vadd.f32 %v66, %v144
  %v146 = vpop.f32.mrf.mxu0
  %147 = vdwg.mxu0
  %149 = vrot.lane.b32.xlu0 %v140, 96
  %v150 = vpop.permute.xlu0 %149
  %vm151 = vcmask 130048
  %v152 = vsel %vm151, %v140, 0
  %v154 = vsel %vm151, %v150, 0
  %156 = vmatprep.subr.mxu0 0.0
  %157 = vmatpush1.xpose.msra.mxu0 0.0
  %158 = vmatprep.subr.mxu0 0.0
  %159 = vmatpush1.xpose.msra.mxu0 0.0
  %160 = vmatprep.subr.mxu0 0.0
  %161 = vmatpush1.xpose.msra.mxu0 0.0
  %162 = vmatprep.subr.mxu0 0.0
  %163 = vmatpush1.xpose.msra.mxu0 0.0
  %164 = vmatprep.subr.mxu0 0.0
  %165 = vmatpush1.xpose.msra.mxu0 0.0
  %166 = vmatprep.subr.mxu0 0.0
  %167 = vmatpush1.xpose.msra.mxu0 0.0
  %168 = vmatprep.subr.mxu0 0.0
  %169 = vmatpush1.xpose.msra.mxu0 0.0
  %170 = vmatprep.subr.mxu0 0.0
  %171 = vmatpush1.xpose.msra.mxu0 0.0
  %172 = vmatprep.subr.mxu0 0.0
  %173 = vmatpush1.xpose.msra.mxu0 0.0
  %174 = vmatprep.subr.mxu0 0.0
  %175 = vmatpush1.xpose.msra.mxu0 0.0
  %176 = vmatprep.subr.mxu0 0.0
  %177 = vmatpush1.xpose.msra.mxu0 0.0
  %178 = vmatprep.subr.mxu0 0.0
  %179 = vmatpush1.xpose.msra.mxu0 0.0
  %180 = vmatprep.subr.mxu0 0.0
  %181 = vmatpush1.xpose.msra.mxu0 0.0
  %182 = vmatprep.subr.mxu0 0.0
  %183 = vmatpush1.xpose.msra.mxu0 0.0
  %184 = vmatprep.subr.mxu0 0.0
  %185 = vmatpush1.xpose.msra.mxu0 0.0
  %186 = vmatprep.subr.mxu0 0.0
  %187 = vmatpush1.xpose.msra.mxu0 %v154
  %188 = vmatprep.subr.mxu0 0.0
  %189 = vmatpush2.xpose.msra.mxu0 0.0
  %190 = vmatprep.subr.mxu0 0.0
  %191 = vmatpush2.xpose.msra.mxu0 0.0
  %192 = vmatprep.subr.mxu0 0.0
  %193 = vmatpush2.xpose.msra.mxu0 0.0
  %194 = vmatprep.subr.mxu0 0.0
  %195 = vmatpush2.xpose.msra.mxu0 0.0
  %196 = vmatprep.subr.mxu0 0.0
  %197 = vmatpush2.xpose.msra.mxu0 0.0
  %198 = vmatprep.subr.mxu0 0.0
  %199 = vmatpush2.xpose.msra.mxu0 0.0
  %200 = vmatprep.subr.mxu0 0.0
  %201 = vmatpush2.xpose.msra.mxu0 0.0
  %202 = vmatprep.subr.mxu0 0.0
  %203 = vmatpush2.xpose.msra.mxu0 0.0
  %204 = vmatprep.subr.mxu0 0.0
  %205 = vmatpush2.xpose.msra.mxu0 0.0
  %206 = vmatprep.subr.mxu0 0.0
  %207 = vmatpush2.xpose.msra.mxu0 0.0
  %208 = vmatprep.subr.mxu0 0.0
  %209 = vmatpush2.xpose.msra.mxu0 0.0
  %210 = vmatprep.subr.mxu0 0.0
  %211 = vmatpush2.xpose.msra.mxu0 0.0
  %212 = vmatprep.subr.mxu0 0.0
  %213 = vmatpush2.xpose.msra.mxu0 0.0
  %214 = vmatprep.subr.mxu0 0.0
  %215 = vmatpush2.xpose.msra.mxu0 0.0
  %216 = vmatprep.subr.mxu0 0.0
  %217 = vmatpush2.xpose.msra.mxu0 0.0
  %218 = vmatprep.subr.mxu0 0.0
  %219 = vmatpush2.xpose.msra.mxu0 0.0
  %220 = vmatprep.mubr.f32.mxu0 0.0
  %221 = vmatmul.mubr.f32.gmra.mxu0 %v152
  %v222 = vpop.f32.mrf.mxu0
  %v223 = vadd.f32 0.0, %v222
  %v224 = vpop.f32.mrf.mxu0
  %225 = vdwg.mxu0
  %227 = vrot.lane.b32.xlu0 %v145, 96
  %v228 = vpop.permute.xlu0 %227
  %v229 = vsel %vm151, %v145, 0
  %v231 = vsel %vm151, %v228, 0
  %233 = vmatprep.subr.mxu0 0.0
  %234 = vmatpush1.xpose.msra.mxu0 0.0
  %235 = vmatprep.subr.mxu0 0.0
  %236 = vmatpush1.xpose.msra.mxu0 0.0
  %237 = vmatprep.subr.mxu0 0.0
  %238 = vmatpush1.xpose.msra.mxu0 0.0
  %239 = vmatprep.subr.mxu0 0.0
  %240 = vmatpush1.xpose.msra.mxu0 0.0
  %241 = vmatprep.subr.mxu0 0.0
  %242 = vmatpush1.xpose.msra.mxu0 0.0
  %243 = vmatprep.subr.mxu0 0.0
  %244 = vmatpush1.xpose.msra.mxu0 0.0
  %245 = vmatprep.subr.mxu0 0.0
  %246 = vmatpush1.xpose.msra.mxu0 0.0
  %247 = vmatprep.subr.mxu0 0.0
  %248 = vmatpush1.xpose.msra.mxu0 0.0
  %249 = vmatprep.subr.mxu0 0.0
  %250 = vmatpush1.xpose.msra.mxu0 0.0
  %251 = vmatprep.subr.mxu0 0.0
  %252 = vmatpush1.xpose.msra.mxu0 0.0
  %253 = vmatprep.subr.mxu0 0.0
  %254 = vmatpush1.xpose.msra.mxu0 0.0
  %255 = vmatprep.subr.mxu0 0.0
  %256 = vmatpush1.xpose.msra.mxu0 0.0
  %257 = vmatprep.subr.mxu0 0.0
  %258 = vmatpush1.xpose.msra.mxu0 0.0
  %259 = vmatprep.subr.mxu0 0.0
  %260 = vmatpush1.xpose.msra.mxu0 0.0
  %261 = vmatprep.subr.mxu0 0.0
  %262 = vmatpush1.xpose.msra.mxu0 0.0
  %263 = vmatprep.subr.mxu0 0.0
  %264 = vmatpush1.xpose.msra.mxu0 %v231
  %265 = vmatprep.subr.mxu0 0.0
  %266 = vmatpush2.xpose.msra.mxu0 0.0
  %267 = vmatprep.subr.mxu0 0.0
  %268 = vmatpush2.xpose.msra.mxu0 0.0
  %269 = vmatprep.subr.mxu0 0.0
  %270 = vmatpush2.xpose.msra.mxu0 0.0
  %271 = vmatprep.subr.mxu0 0.0
  %272 = vmatpush2.xpose.msra.mxu0 0.0
  %273 = vmatprep.subr.mxu0 0.0
  %274 = vmatpush2.xpose.msra.mxu0 0.0
  %275 = vmatprep.subr.mxu0 0.0
  %276 = vmatpush2.xpose.msra.mxu0 0.0
  %277 = vmatprep.subr.mxu0 0.0
  %278 = vmatpush2.xpose.msra.mxu0 0.0
  %279 = vmatprep.subr.mxu0 0.0
  %280 = vmatpush2.xpose.msra.mxu0 0.0
  %281 = vmatprep.subr.mxu0 0.0
  %282 = vmatpush2.xpose.msra.mxu0 0.0
  %283 = vmatprep.subr.mxu0 0.0
  %284 = vmatpush2.xpose.msra.mxu0 0.0
  %285 = vmatprep.subr.mxu0 0.0
  %286 = vmatpush2.xpose.msra.mxu0 0.0
  %287 = vmatprep.subr.mxu0 0.0
  %288 = vmatpush2.xpose.msra.mxu0 0.0
  %289 = vmatprep.subr.mxu0 0.0
  %290 = vmatpush2.xpose.msra.mxu0 0.0
  %291 = vmatprep.subr.mxu0 0.0
  %292 = vmatpush2.xpose.msra.mxu0 0.0
  %293 = vmatprep.subr.mxu0 0.0
  %294 = vmatpush2.xpose.msra.mxu0 0.0
  %295 = vmatprep.subr.mxu0 0.0
  %296 = vmatpush2.xpose.msra.mxu0 0.0
  %297 = vmatprep.mubr.f32.mxu0 0.0
  %298 = vmatmul.mubr.f32.gmra.mxu0 %v229
  %v299 = vpop.f32.mrf.mxu0
  %v300 = vadd.f32 0.0, %v299
  %v301 = vpop.f32.mrf.mxu0
  %302 = vdwg.mxu0
  %vm303 = vcmask 64512
  %v304 = vsel %vm303, %v223, -inf
  %305 = vmax.xlane.f32.xlu0 %v304
  %v306 = vpop.xlane.xlu0 %305
  %v307 = vsel %vm303, %v300, -inf
  %308 = vmax.xlane.f32.xlu0 %v307
  %v309 = vpop.xlane.xlu0 %308
  %v310 = vsub.f32 %v223, %v306
  %v311 = vsub.f32 %v300, %v309
  %v312 = vmul.f32 %v310, 1.442695
  %v313 = vpow.pop %v312
  %v314 = vmul.f32 %v311, 1.442695
  %v315 = vpow.pop %v314
  %v316 = vsel %vm303, %v313, 0.0
  %317 = vadd.xlane.f32.xlu0 %v316
  %v318 = vpop.xlane.xlu0 %317
  %v319 = vsel %vm303, %v315, 0.0
  %320 = vadd.xlane.f32.xlu0 %v319
  %v321 = vpop.xlane.xlu0 %320
  %v322 = vrcp.pop %v318
  %v323 = vmul.f32 %v313, %v322
  %v324 = vrcp.pop %v321
  %v325 = vmul.f32 %v315, %v324
  %326 = vrot.lane.b32.xlu0 %v140, 64
  %v327 = vpop.permute.xlu0 %326
  %v330 = vsel %vm303, %v323, 0
  %332 = vmatprep.subr.mxu0 0.0
  %333 = vmatpush1.msra.mxu0 0.0
  %334 = vmatprep.subr.mxu0 0.0
  %335 = vmatpush1.msra.mxu0 0.0
  %336 = vmatprep.subr.mxu0 0.0
  %337 = vmatpush1.msra.mxu0 0.0
  %338 = vmatprep.subr.mxu0 0.0
  %339 = vmatpush1.msra.mxu0 0.0
  %340 = vmatprep.subr.mxu0 0.0
  %341 = vmatpush1.msra.mxu0 0.0
  %342 = vmatprep.subr.mxu0 0.0
  %343 = vmatpush1.msra.mxu0 0.0
  %344 = vmatprep.subr.mxu0 0.0
  %345 = vmatpush1.msra.mxu0 0.0
  %346 = vmatprep.subr.mxu0 0.0
  %347 = vmatpush1.msra.mxu0 0.0
  %348 = vmatprep.subr.mxu0 0.0
  %349 = vmatpush1.msra.mxu0 0.0
  %350 = vmatprep.subr.mxu0 0.0
  %351 = vmatpush1.msra.mxu0 0.0
  %352 = vmatprep.subr.mxu0 0.0
  %353 = vmatpush1.msra.mxu0 0.0
  %354 = vmatprep.subr.mxu0 0.0
  %355 = vmatpush1.msra.mxu0 0.0
  %356 = vmatprep.subr.mxu0 0.0
  %357 = vmatpush1.msra.mxu0 0.0
  %358 = vmatprep.subr.mxu0 0.0
  %359 = vmatpush1.msra.mxu0 0.0
  %360 = vmatprep.subr.mxu0 0.0
  %361 = vmatpush1.msra.mxu0 0.0
  %362 = vmatprep.subr.mxu0 0.0
  %363 = vmatpush1.msra.mxu0 %v327
  %364 = vmatprep.subr.mxu0 0.0
  %365 = vmatpush2.msra.mxu0 0.0
  %366 = vmatprep.subr.mxu0 0.0
  %367 = vmatpush2.msra.mxu0 0.0
  %368 = vmatprep.subr.mxu0 0.0
  %369 = vmatpush2.msra.mxu0 0.0
  %370 = vmatprep.subr.mxu0 0.0
  %371 = vmatpush2.msra.mxu0 0.0
  %372 = vmatprep.subr.mxu0 0.0
  %373 = vmatpush2.msra.mxu0 0.0
  %374 = vmatprep.subr.mxu0 0.0
  %375 = vmatpush2.msra.mxu0 0.0
  %376 = vmatprep.subr.mxu0 0.0
  %377 = vmatpush2.msra.mxu0 0.0
  %378 = vmatprep.subr.mxu0 0.0
  %379 = vmatpush2.msra.mxu0 0.0
  %380 = vmatprep.subr.mxu0 0.0
  %381 = vmatpush2.msra.mxu0 0.0
  %382 = vmatprep.subr.mxu0 0.0
  %383 = vmatpush2.msra.mxu0 0.0
  %384 = vmatprep.subr.mxu0 0.0
  %385 = vmatpush2.msra.mxu0 0.0
  %386 = vmatprep.subr.mxu0 0.0
  %387 = vmatpush2.msra.mxu0 0.0
  %388 = vmatprep.subr.mxu0 0.0
  %389 = vmatpush2.msra.mxu0 0.0
  %390 = vmatprep.subr.mxu0 0.0
  %391 = vmatpush2.msra.mxu0 0.0
  %392 = vmatprep.subr.mxu0 0.0
  %393 = vmatpush2.msra.mxu0 0.0
  %394 = vmatprep.subr.mxu0 0.0
  %395 = vmatpush2.msra.mxu0 0.0
  %396 = vmatprep.mubr.f32.mxu0 0.0
  %397 = vmatmul.mubr.f32.gmra.mxu0 %v330
  %v398 = vpop.f32.mrf.mxu0
  %v399 = vadd.f32 0.0, %v398
  %v400 = vpop.f32.mrf.mxu0
  %401 = vdwg.mxu0
  %402 = vrot.lane.b32.xlu0 %v145, 64
  %v403 = vpop.permute.xlu0 %402
  %v406 = vsel %vm303, %v325, 0
  %408 = vmatprep.subr.mxu0 0.0
  %409 = vmatpush1.msra.mxu0 0.0
  %410 = vmatprep.subr.mxu0 0.0
  %411 = vmatpush1.msra.mxu0 0.0
  %412 = vmatprep.subr.mxu0 0.0
  %413 = vmatpush1.msra.mxu0 0.0
  %414 = vmatprep.subr.mxu0 0.0
  %415 = vmatpush1.msra.mxu0 0.0
  %416 = vmatprep.subr.mxu0 0.0
  %417 = vmatpush1.msra.mxu0 0.0
  %418 = vmatprep.subr.mxu0 0.0
  %419 = vmatpush1.msra.mxu0 0.0
  %420 = vmatprep.subr.mxu0 0.0
  %421 = vmatpush1.msra.mxu0 0.0
  %422 = vmatprep.subr.mxu0 0.0
  %423 = vmatpush1.msra.mxu0 0.0
  %424 = vmatprep.subr.mxu0 0.0
  %425 = vmatpush1.msra.mxu0 0.0
  %426 = vmatprep.subr.mxu0 0.0
  %427 = vmatpush1.msra.mxu0 0.0
  %428 = vmatprep.subr.mxu0 0.0
  %429 = vmatpush1.msra.mxu0 0.0
  %430 = vmatprep.subr.mxu0 0.0
  %431 = vmatpush1.msra.mxu0 0.0
  %432 = vmatprep.subr.mxu0 0.0
  %433 = vmatpush1.msra.mxu0 0.0
  %434 = vmatprep.subr.mxu0 0.0
  %435 = vmatpush1.msra.mxu0 0.0
  %436 = vmatprep.subr.mxu0 0.0
  %437 = vmatpush1.msra.mxu0 0.0
  %438 = vmatprep.subr.mxu0 0.0
  %439 = vmatpush1.msra.mxu0 %v403
  %440 = vmatprep.subr.mxu0 0.0
  %441 = vmatpush2.msra.mxu0 0.0
  %442 = vmatprep.subr.mxu0 0.0
  %443 = vmatpush2.msra.mxu0 0.0
  %444 = vmatprep.subr.mxu0 0.0
  %445 = vmatpush2.msra.mxu0 0.0
  %446 = vmatprep.subr.mxu0 0.0
  %447 = vmatpush2.msra.mxu0 0.0
  %448 = vmatprep.subr.mxu0 0.0
  %449 = vmatpush2.msra.mxu0 0.0
  %450 = vmatprep.subr.mxu0 0.0
  %451 = vmatpush2.msra.mxu0 0.0
  %452 = vmatprep.subr.mxu0 0.0
  %453 = vmatpush2.msra.mxu0 0.0
  %454 = vmatprep.subr.mxu0 0.0
  %455 = vmatpush2.msra.mxu0 0.0
  %456 = vmatprep.subr.mxu0 0.0
  %457 = vmatpush2.msra.mxu0 0.0
  %458 = vmatprep.subr.mxu0 0.0
  %459 = vmatpush2.msra.mxu0 0.0
  %460 = vmatprep.subr.mxu0 0.0
  %461 = vmatpush2.msra.mxu0 0.0
  %462 = vmatprep.subr.mxu0 0.0
  %463 = vmatpush2.msra.mxu0 0.0
  %464 = vmatprep.subr.mxu0 0.0
  %465 = vmatpush2.msra.mxu0 0.0
  %466 = vmatprep.subr.mxu0 0.0
  %467 = vmatpush2.msra.mxu0 0.0
  %468 = vmatprep.subr.mxu0 0.0
  %469 = vmatpush2.msra.mxu0 0.0
  %470 = vmatprep.subr.mxu0 0.0
  %471 = vmatpush2.msra.mxu0 0.0
  %472 = vmatprep.mubr.f32.mxu0 0.0
  %473 = vmatmul.mubr.f32.gmra.mxu0 %v406
  %v474 = vpop.f32.mrf.mxu0
  %v475 = vadd.f32 0.0, %v474
  %v476 = vpop.f32.mrf.mxu0
  %477 = vdwg.mxu0
  %478 = vrot.lane.b32.xlu0 %v140, 112
  %v479 = vpop.permute.xlu0 %478
  %480 = vrot.lane.b32.xlu0 %v140, 80
  %v481 = vpop.permute.xlu0 %480
  %v482 = vsel %vm151, %v479, 0
  %v484 = vsel %vm151, %v481, 0
  %486 = vmatprep.subr.mxu0 0.0
  %487 = vmatpush1.xpose.msra.mxu0 0.0
  %488 = vmatprep.subr.mxu0 0.0
  %489 = vmatpush1.xpose.msra.mxu0 0.0
  %490 = vmatprep.subr.mxu0 0.0
  %491 = vmatpush1.xpose.msra.mxu0 0.0
  %492 = vmatprep.subr.mxu0 0.0
  %493 = vmatpush1.xpose.msra.mxu0 0.0
  %494 = vmatprep.subr.mxu0 0.0
  %495 = vmatpush1.xpose.msra.mxu0 0.0
  %496 = vmatprep.subr.mxu0 0.0
  %497 = vmatpush1.xpose.msra.mxu0 0.0
  %498 = vmatprep.subr.mxu0 0.0
  %499 = vmatpush1.xpose.msra.mxu0 0.0
  %500 = vmatprep.subr.mxu0 0.0
  %501 = vmatpush1.xpose.msra.mxu0 0.0
  %502 = vmatprep.subr.mxu0 0.0
  %503 = vmatpush1.xpose.msra.mxu0 0.0
  %504 = vmatprep.subr.mxu0 0.0
  %505 = vmatpush1.xpose.msra.mxu0 0.0
  %506 = vmatprep.subr.mxu0 0.0
  %507 = vmatpush1.xpose.msra.mxu0 0.0
  %508 = vmatprep.subr.mxu0 0.0
  %509 = vmatpush1.xpose.msra.mxu0 0.0
  %510 = vmatprep.subr.mxu0 0.0
  %511 = vmatpush1.xpose.msra.mxu0 0.0
  %512 = vmatprep.subr.mxu0 0.0
  %513 = vmatpush1.xpose.msra.mxu0 0.0
  %514 = vmatprep.subr.mxu0 0.0
  %515 = vmatpush1.xpose.msra.mxu0 0.0
  %516 = vmatprep.subr.mxu0 0.0
  %517 = vmatpush1.xpose.msra.mxu0 %v484
  %518 = vmatprep.subr.mxu0 0.0
  %519 = vmatpush2.xpose.msra.mxu0 0.0
  %520 = vmatprep.subr.mxu0 0.0
  %521 = vmatpush2.xpose.msra.mxu0 0.0
  %522 = vmatprep.subr.mxu0 0.0
  %523 = vmatpush2.xpose.msra.mxu0 0.0
  %524 = vmatprep.subr.mxu0 0.0
  %525 = vmatpush2.xpose.msra.mxu0 0.0
  %526 = vmatprep.subr.mxu0 0.0
  %527 = vmatpush2.xpose.msra.mxu0 0.0
  %528 = vmatprep.subr.mxu0 0.0
  %529 = vmatpush2.xpose.msra.mxu0 0.0
  %530 = vmatprep.subr.mxu0 0.0
  %531 = vmatpush2.xpose.msra.mxu0 0.0
  %532 = vmatprep.subr.mxu0 0.0
  %533 = vmatpush2.xpose.msra.mxu0 0.0
  %534 = vmatprep.subr.mxu0 0.0
  %535 = vmatpush2.xpose.msra.mxu0 0.0
  %536 = vmatprep.subr.mxu0 0.0
  %537 = vmatpush2.xpose.msra.mxu0 0.0
  %538 = vmatprep.subr.mxu0 0.0
  %539 = vmatpush2.xpose.msra.mxu0 0.0
  %540 = vmatprep.subr.mxu0 0.0
  %541 = vmatpush2.xpose.msra.mxu0 0.0
  %542 = vmatprep.subr.mxu0 0.0
  %543 = vmatpush2.xpose.msra.mxu0 0.0
  %544 = vmatprep.subr.mxu0 0.0
  %545 = vmatpush2.xpose.msra.mxu0 0.0
  %546 = vmatprep.subr.mxu0 0.0
  %547 = vmatpush2.xpose.msra.mxu0 0.0
  %548 = vmatprep.subr.mxu0 0.0
  %549 = vmatpush2.xpose.msra.mxu0 0.0
  %550 = vmatprep.mubr.f32.mxu0 0.0
  %551 = vmatmul.mubr.f32.gmra.mxu0 %v482
  %v552 = vpop.f32.mrf.mxu0
  %v553 = vadd.f32 0.0, %v552
  %v554 = vpop.f32.mrf.mxu0
  %555 = vdwg.mxu0
  %556 = vrot.lane.b32.xlu0 %v145, 112
  %v557 = vpop.permute.xlu0 %556
  %558 = vrot.lane.b32.xlu0 %v145, 80
  %v559 = vpop.permute.xlu0 %558
  %v560 = vsel %vm151, %v557, 0
  %v562 = vsel %vm151, %v559, 0
  %564 = vmatprep.subr.mxu0 0.0
  %565 = vmatpush1.xpose.msra.mxu0 0.0
  %566 = vmatprep.subr.mxu0 0.0
  %567 = vmatpush1.xpose.msra.mxu0 0.0
  %568 = vmatprep.subr.mxu0 0.0
  %569 = vmatpush1.xpose.msra.mxu0 0.0
  %570 = vmatprep.subr.mxu0 0.0
  %571 = vmatpush1.xpose.msra.mxu0 0.0
  %572 = vmatprep.subr.mxu0 0.0
  %573 = vmatpush1.xpose.msra.mxu0 0.0
  %574 = vmatprep.subr.mxu0 0.0
  %575 = vmatpush1.xpose.msra.mxu0 0.0
  %576 = vmatprep.subr.mxu0 0.0
  %577 = vmatpush1.xpose.msra.mxu0 0.0
  %578 = vmatprep.subr.mxu0 0.0
  %579 = vmatpush1.xpose.msra.mxu0 0.0
  %580 = vmatprep.subr.mxu0 0.0
  %581 = vmatpush1.xpose.msra.mxu0 0.0
  %582 = vmatprep.subr.mxu0 0.0
  %583 = vmatpush1.xpose.msra.mxu0 0.0
  %584 = vmatprep.subr.mxu0 0.0
  %585 = vmatpush1.xpose.msra.mxu0 0.0
  %586 = vmatprep.subr.mxu0 0.0
  %587 = vmatpush1.xpose.msra.mxu0 0.0
  %588 = vmatprep.subr.mxu0 0.0
  %589 = vmatpush1.xpose.msra.mxu0 0.0
  %590 = vmatprep.subr.mxu0 0.0
  %591 = vmatpush1.xpose.msra.mxu0 0.0
  %592 = vmatprep.subr.mxu0 0.0
  %593 = vmatpush1.xpose.msra.mxu0 0.0
  %594 = vmatprep.subr.mxu0 0.0
  %595 = vmatpush1.xpose.msra.mxu0 %v562
  %596 = vmatprep.subr.mxu0 0.0
  %597 = vmatpush2.xpose.msra.mxu0 0.0
  %598 = vmatprep.subr.mxu0 0.0
  %599 = vmatpush2.xpose.msra.mxu0 0.0
  %600 = vmatprep.subr.mxu0 0.0
  %601 = vmatpush2.xpose.msra.mxu0 0.0
  %602 = vmatprep.subr.mxu0 0.0
  %603 = vmatpush2.xpose.msra.mxu0 0.0
  %604 = vmatprep.subr.mxu0 0.0
  %605 = vmatpush2.xpose.msra.mxu0 0.0
  %606 = vmatprep.subr.mxu0 0.0
  %607 = vmatpush2.xpose.msra.mxu0 0.0
  %608 = vmatprep.subr.mxu0 0.0
  %609 = vmatpush2.xpose.msra.mxu0 0.0
  %610 = vmatprep.subr.mxu0 0.0
  %611 = vmatpush2.xpose.msra.mxu0 0.0
  %612 = vmatprep.subr.mxu0 0.0
  %613 = vmatpush2.xpose.msra.mxu0 0.0
  %614 = vmatprep.subr.mxu0 0.0
  %615 = vmatpush2.xpose.msra.mxu0 0.0
  %616 = vmatprep.subr.mxu0 0.0
  %617 = vmatpush2.xpose.msra.mxu0 0.0
  %618 = vmatprep.subr.mxu0 0.0
  %619 = vmatpush2.xpose.msra.mxu0 0.0
  %620 = vmatprep.subr.mxu0 0.0
  %621 = vmatpush2.xpose.msra.mxu0 0.0
  %622 = vmatprep.subr.mxu0 0.0
  %623 = vmatpush2.xpose.msra.mxu0 0.0
  %624 = vmatprep.subr.mxu0 0.0
  %625 = vmatpush2.xpose.msra.mxu0 0.0
  %626 = vmatprep.subr.mxu0 0.0
  %627 = vmatpush2.xpose.msra.mxu0 0.0
  %628 = vmatprep.mubr.f32.mxu0 0.0
  %629 = vmatmul.mubr.f32.gmra.mxu0 %v560
  %v630 = vpop.f32.mrf.mxu0
  %v631 = vadd.f32 0.0, %v630
  %v632 = vpop.f32.mrf.mxu0
  %633 = vdwg.mxu0
  %v634 = vsel %vm303, %v553, -inf
  %635 = vmax.xlane.f32.xlu0 %v634
  %v636 = vpop.xlane.xlu0 %635
  %v637 = vsel %vm303, %v631, -inf
  %638 = vmax.xlane.f32.xlu0 %v637
  %v639 = vpop.xlane.xlu0 %638
  %v640 = vsub.f32 %v553, %v636
  %v641 = vsub.f32 %v631, %v639
  %v642 = vmul.f32 %v640, 1.442695
  %v643 = vpow.pop %v642
  %v644 = vmul.f32 %v641, 1.442695
  %v645 = vpow.pop %v644
  %v646 = vsel %vm303, %v643, 0.0
  %647 = vadd.xlane.f32.xlu0 %v646
  %v648 = vpop.xlane.xlu0 %647
  %v649 = vsel %vm303, %v645, 0.0
  %650 = vadd.xlane.f32.xlu0 %v649
  %v651 = vpop.xlane.xlu0 %650
  %v652 = vrcp.pop %v648
  %v653 = vmul.f32 %v643, %v652
  %v654 = vrcp.pop %v651
  %v655 = vmul.f32 %v645, %v654
  %656 = vrot.lane.b32.xlu0 %v140, 48
  %v657 = vpop.permute.xlu0 %656
  %v660 = vsel %vm303, %v653, 0
  %662 = vmatprep.subr.mxu0 0.0
  %663 = vmatpush1.msra.mxu0 0.0
  %664 = vmatprep.subr.mxu0 0.0
  %665 = vmatpush1.msra.mxu0 0.0
  %666 = vmatprep.subr.mxu0 0.0
  %667 = vmatpush1.msra.mxu0 0.0
  %668 = vmatprep.subr.mxu0 0.0
  %669 = vmatpush1.msra.mxu0 0.0
  %670 = vmatprep.subr.mxu0 0.0
  %671 = vmatpush1.msra.mxu0 0.0
  %672 = vmatprep.subr.mxu0 0.0
  %673 = vmatpush1.msra.mxu0 0.0
  %674 = vmatprep.subr.mxu0 0.0
  %675 = vmatpush1.msra.mxu0 0.0
  %676 = vmatprep.subr.mxu0 0.0
  %677 = vmatpush1.msra.mxu0 0.0
  %678 = vmatprep.subr.mxu0 0.0
  %679 = vmatpush1.msra.mxu0 0.0
  %680 = vmatprep.subr.mxu0 0.0
  %681 = vmatpush1.msra.mxu0 0.0
  %682 = vmatprep.subr.mxu0 0.0
  %683 = vmatpush1.msra.mxu0 0.0
  %684 = vmatprep.subr.mxu0 0.0
  %685 = vmatpush1.msra.mxu0 0.0
  %686 = vmatprep.subr.mxu0 0.0
  %687 = vmatpush1.msra.mxu0 0.0
  %688 = vmatprep.subr.mxu0 0.0
  %689 = vmatpush1.msra.mxu0 0.0
  %690 = vmatprep.subr.mxu0 0.0
  %691 = vmatpush1.msra.mxu0 0.0
  %692 = vmatprep.subr.mxu0 0.0
  %693 = vmatpush1.msra.mxu0 %v657
  %694 = vmatprep.subr.mxu0 0.0
  %695 = vmatpush2.msra.mxu0 0.0
  %696 = vmatprep.subr.mxu0 0.0
  %697 = vmatpush2.msra.mxu0 0.0
  %698 = vmatprep.subr.mxu0 0.0
  %699 = vmatpush2.msra.mxu0 0.0
  %700 = vmatprep.subr.mxu0 0.0
  %701 = vmatpush2.msra.mxu0 0.0
  %702 = vmatprep.subr.mxu0 0.0
  %703 = vmatpush2.msra.mxu0 0.0
  %704 = vmatprep.subr.mxu0 0.0
  %705 = vmatpush2.msra.mxu0 0.0
  %706 = vmatprep.subr.mxu0 0.0
  %707 = vmatpush2.msra.mxu0 0.0
  %708 = vmatprep.subr.mxu0 0.0
  %709 = vmatpush2.msra.mxu0 0.0
  %710 = vmatprep.subr.mxu0 0.0
  %711 = vmatpush2.msra.mxu0 0.0
  %712 = vmatprep.subr.mxu0 0.0
  %713 = vmatpush2.msra.mxu0 0.0
  %714 = vmatprep.subr.mxu0 0.0
  %715 = vmatpush2.msra.mxu0 0.0
  %716 = vmatprep.subr.mxu0 0.0
  %717 = vmatpush2.msra.mxu0 0.0
  %718 = vmatprep.subr.mxu0 0.0
  %719 = vmatpush2.msra.mxu0 0.0
  %720 = vmatprep.subr.mxu0 0.0
  %721 = vmatpush2.msra.mxu0 0.0
  %722 = vmatprep.subr.mxu0 0.0
  %723 = vmatpush2.msra.mxu0 0.0
  %724 = vmatprep.subr.mxu0 0.0
  %725 = vmatpush2.msra.mxu0 0.0
  %726 = vmatprep.mubr.f32.mxu0 0.0
  %727 = vmatmul.mubr.f32.gmra.mxu0 %v660
  %v728 = vpop.f32.mrf.mxu0
  %v729 = vadd.f32 0.0, %v728
  %v730 = vpop.f32.mrf.mxu0
  %731 = vdwg.mxu0
  %732 = vrot.lane.b32.xlu0 %v145, 48
  %v733 = vpop.permute.xlu0 %732
  %v736 = vsel %vm303, %v655, 0
  %738 = vmatprep.subr.mxu0 0.0
  %739 = vmatpush1.msra.mxu0 0.0
  %740 = vmatprep.subr.mxu0 0.0
  %741 = vmatpush1.msra.mxu0 0.0
  %742 = vmatprep.subr.mxu0 0.0
  %743 = vmatpush1.msra.mxu0 0.0
  %744 = vmatprep.subr.mxu0 0.0
  %745 = vmatpush1.msra.mxu0 0.0
  %746 = vmatprep.subr.mxu0 0.0
  %747 = vmatpush1.msra.mxu0 0.0
  %748 = vmatprep.subr.mxu0 0.0
  %749 = vmatpush1.msra.mxu0 0.0
  %750 = vmatprep.subr.mxu0 0.0
  %751 = vmatpush1.msra.mxu0 0.0
  %752 = vmatprep.subr.mxu0 0.0
  %753 = vmatpush1.msra.mxu0 0.0
  %754 = vmatprep.subr.mxu0 0.0
  %755 = vmatpush1.msra.mxu0 0.0
  %756 = vmatprep.subr.mxu0 0.0
  %757 = vmatpush1.msra.mxu0 0.0
  %758 = vmatprep.subr.mxu0 0.0
  %759 = vmatpush1.msra.mxu0 0.0
  %760 = vmatprep.subr.mxu0 0.0
  %761 = vmatpush1.msra.mxu0 0.0
  %762 = vmatprep.subr.mxu0 0.0
  %763 = vmatpush1.msra.mxu0 0.0
  %764 = vmatprep.subr.mxu0 0.0
  %765 = vmatpush1.msra.mxu0 0.0
  %766 = vmatprep.subr.mxu0 0.0
  %767 = vmatpush1.msra.mxu0 0.0
  %768 = vmatprep.subr.mxu0 0.0
  %769 = vmatpush1.msra.mxu0 %v733
  %770 = vmatprep.subr.mxu0 0.0
  %771 = vmatpush2.msra.mxu0 0.0
  %772 = vmatprep.subr.mxu0 0.0
  %773 = vmatpush2.msra.mxu0 0.0
  %774 = vmatprep.subr.mxu0 0.0
  %775 = vmatpush2.msra.mxu0 0.0
  %776 = vmatprep.subr.mxu0 0.0
  %777 = vmatpush2.msra.mxu0 0.0
  %778 = vmatprep.subr.mxu0 0.0
  %779 = vmatpush2.msra.mxu0 0.0
  %780 = vmatprep.subr.mxu0 0.0
  %781 = vmatpush2.msra.mxu0 0.0
  %782 = vmatprep.subr.mxu0 0.0
  %783 = vmatpush2.msra.mxu0 0.0
  %784 = vmatprep.subr.mxu0 0.0
  %785 = vmatpush2.msra.mxu0 0.0
  %786 = vmatprep.subr.mxu0 0.0
  %787 = vmatpush2.msra.mxu0 0.0
  %788 = vmatprep.subr.mxu0 0.0
  %789 = vmatpush2.msra.mxu0 0.0
  %790 = vmatprep.subr.mxu0 0.0
  %791 = vmatpush2.msra.mxu0 0.0
  %792 = vmatprep.subr.mxu0 0.0
  %793 = vmatpush2.msra.mxu0 0.0
  %794 = vmatprep.subr.mxu0 0.0
  %795 = vmatpush2.msra.mxu0 0.0
  %796 = vmatprep.subr.mxu0 0.0
  %797 = vmatpush2.msra.mxu0 0.0
  %798 = vmatprep.subr.mxu0 0.0
  %799 = vmatpush2.msra.mxu0 0.0
  %800 = vmatprep.subr.mxu0 0.0
  %801 = vmatpush2.msra.mxu0 0.0
  %802 = vmatprep.mubr.f32.mxu0 0.0
  %803 = vmatmul.mubr.f32.gmra.mxu0 %v736
  %v804 = vpop.f32.mrf.mxu0
  %v805 = vadd.f32 0.0, %v804
  %v806 = vpop.f32.mrf.mxu0
  %807 = vdwg.mxu0
  %v810 = vrot.slane %v475, 7
  %vm811 = vcmask 1041409
  %v812 = vsel %vm811, %v810, %v399
  %v816 = vrot.slane %v805, 7
  %v817 = vsel %vm811, %v816, %v729
  %818 = vrot.lane.b32.xlu0 %v817, 16
  %v819 = vpop.permute.xlu0 %818
  %v821 = vsel %vm151, %v812, %v819
  %v822 = vld [vmem:[%s1 + $0x20] sm:$0xff]
  %v823 = vld [vmem:[%s1 + $0x28] sm:$0xff]
  %v824 = vld [vmem:[%s1 + $0x30] sm:$0xff]
  %v825 = vld [vmem:[%s1 + $0x38] sm:$0xff]
  %v826 = vld [vmem:[%s2 + $0x3] sm:$0x1]
  %v827 = vlaneseq
  %v828 = vshrl.u32 %v827, 7
  %v829 = vsub.s32 0, %v828
  %v830 = vrot.slane %v826, %v829
  %v832 = vsel %vm18, %v821, 0
  %834 = vmatprep.subr.mxu0 0.0
  %835 = vmatpush1.msra.mxu0 0.0
  %836 = vmatprep.subr.mxu0 0.0
  %837 = vmatpush1.msra.mxu0 0.0
  %838 = vmatprep.subr.mxu0 0.0
  %839 = vmatpush1.msra.mxu0 0.0
  %840 = vmatprep.subr.mxu0 0.0
  %841 = vmatpush1.msra.mxu0 0.0
  %842 = vmatprep.subr.mxu0 0.0
  %843 = vmatpush1.msra.mxu0 0.0
  %844 = vmatprep.subr.mxu0 0.0
  %845 = vmatpush1.msra.mxu0 0.0
  %846 = vmatprep.subr.mxu0 0.0
  %847 = vmatpush1.msra.mxu0 0.0
  %848 = vmatprep.subr.mxu0 0.0
  %849 = vmatpush1.msra.mxu0 0.0
  %850 = vmatprep.subr.mxu0 0.0
  %851 = vmatpush1.msra.mxu0 0.0
  %852 = vmatprep.subr.mxu0 0.0
  %853 = vmatpush1.msra.mxu0 0.0
  %854 = vmatprep.subr.mxu0 0.0
  %855 = vmatpush1.msra.mxu0 0.0
  %856 = vmatprep.subr.mxu0 0.0
  %857 = vmatpush1.msra.mxu0 0.0
  %858 = vmatprep.subr.mxu0 0.0
  %859 = vmatpush1.msra.mxu0 %v825
  %860 = vmatprep.subr.mxu0 0.0
  %861 = vmatpush1.msra.mxu0 %v824
  %862 = vmatprep.subr.mxu0 0.0
  %863 = vmatpush1.msra.mxu0 %v823
  %864 = vmatprep.subr.mxu0 0.0
  %865 = vmatpush1.msra.mxu0 %v822
  %866 = vmatprep.subr.mxu0 0.0
  %867 = vmatpush2.msra.mxu0 0.0
  %868 = vmatprep.subr.mxu0 0.0
  %869 = vmatpush2.msra.mxu0 0.0
  %870 = vmatprep.subr.mxu0 0.0
  %871 = vmatpush2.msra.mxu0 0.0
  %872 = vmatprep.subr.mxu0 0.0
  %873 = vmatpush2.msra.mxu0 0.0
  %874 = vmatprep.subr.mxu0 0.0
  %875 = vmatpush2.msra.mxu0 0.0
  %876 = vmatprep.subr.mxu0 0.0
  %877 = vmatpush2.msra.mxu0 0.0
  %878 = vmatprep.subr.mxu0 0.0
  %879 = vmatpush2.msra.mxu0 0.0
  %880 = vmatprep.subr.mxu0 0.0
  %881 = vmatpush2.msra.mxu0 0.0
  %882 = vmatprep.subr.mxu0 0.0
  %883 = vmatpush2.msra.mxu0 0.0
  %884 = vmatprep.subr.mxu0 0.0
  %885 = vmatpush2.msra.mxu0 0.0
  %886 = vmatprep.subr.mxu0 0.0
  %887 = vmatpush2.msra.mxu0 0.0
  %888 = vmatprep.subr.mxu0 0.0
  %889 = vmatpush2.msra.mxu0 0.0
  %890 = vmatprep.subr.mxu0 0.0
  %891 = vmatpush2.msra.mxu0 0.0
  %892 = vmatprep.subr.mxu0 0.0
  %893 = vmatpush2.msra.mxu0 0.0
  %894 = vmatprep.subr.mxu0 0.0
  %895 = vmatpush2.msra.mxu0 0.0
  %896 = vmatprep.subr.mxu0 0.0
  %897 = vmatpush2.msra.mxu0 0.0
  %898 = vmatprep.mubr.f32.mxu0 0.0
  %899 = vmatmul.mubr.f32.gmra.mxu0 %v832
  %v900 = vpop.f32.mrf.mxu0
  %v901 = vadd.f32 %v830, %v900
  %v902 = vpop.f32.mrf.mxu0
  %903 = vdwg.mxu0
  %v905 = vrot.slane %v901, 1
  %v908 = vadd.f32 %v56, %v901
  %v909 = vadd.f32 %v57, %v905
  %v910 = vld [vmem:[%s2 + $0x4] sm:$0x1]
  %v911 = vld [vmem:[%s2 + $0x5] sm:$0x1]
  %v914 = vrot.slane %v909, 7
  %v915 = vsel %vm811, %v914, %v908
  %vm917 = vcmask 254976
  %v918 = vsel %vm917, %v915, 0.0
  %919 = vadd.xlane.f32.xlu0 %v918
  %v920 = vpop.xlane.xlu0 %919
  %v921 = vmul.f32 %v920, %v25
  %v923 = vrot.slane %v921, 1
  %v926 = vsub.f32 %v908, %v921
  %v927 = vsub.f32 %v909, %v923
  %v928 = vmul.f32 %v926, %v926
  %v929 = vmul.f32 %v927, %v927
  %v932 = vrot.slane %v929, 7
  %v933 = vsel %vm811, %v932, %v928
  %v935 = vsel %vm917, %v933, 0.0
  %936 = vadd.xlane.f32.xlu0 %v935
  %v937 = vpop.xlane.xlu0 %936
  %v938 = vmul.f32 %v937, %v25
  %v939 = vadd.f32 %v938, 1e-12
  %v940 = vrsqrt.pop %v939
  %v942 = vrot.slane %v940, 1
  %v945 = vmul.f32 %v926, %v940
  %v946 = vmul.f32 %v927, %v942
  %v947 = vlaneseq
  %v948 = vshrl.u32 %v947, 7
  %v949 = vsub.s32 0, %v948
  %v950 = vrot.slane %v910, %v949
  %v951 = vmul.f32 %v945, %v950
  %v952 = vmul.f32 %v946, %v950
  %v953 = vlaneseq
  %v954 = vshrl.u32 %v953, 7
  %v955 = vsub.s32 0, %v954
  %v956 = vrot.slane %v911, %v955
  %v957 = vadd.f32 %v951, %v956
  %v958 = vadd.f32 %v952, %v956
  %v959 = vld [vmem:[%s1 + $0x40] sm:$0xff]
  %v960 = vld [vmem:[%s1 + $0x48] sm:$0xff]
  %v961 = vld [vmem:[%s1 + $0x50] sm:$0xff]
  %v962 = vld [vmem:[%s1 + $0x58] sm:$0xff]
  %v963 = vld [vmem:[%s2 + $0x6] sm:$0x1]
  %v964 = vlaneseq
  %v965 = vshrl.u32 %v964, 7
  %v966 = vsub.s32 0, %v965
  %v967 = vrot.slane %v963, %v966
  %v970 = vrot.slane %v958, 7
  %v971 = vsel %vm811, %v970, %v957
  %v972 = vsel %vm18, %v971, 0
  %974 = vmatprep.subr.mxu0 0.0
  %975 = vmatpush1.msra.mxu0 0.0
  %976 = vmatprep.subr.mxu0 0.0
  %977 = vmatpush1.msra.mxu0 0.0
  %978 = vmatprep.subr.mxu0 0.0
  %979 = vmatpush1.msra.mxu0 0.0
  %980 = vmatprep.subr.mxu0 0.0
  %981 = vmatpush1.msra.mxu0 0.0
  %982 = vmatprep.subr.mxu0 0.0
  %983 = vmatpush1.msra.mxu0 0.0
  %984 = vmatprep.subr.mxu0 0.0
  %985 = vmatpush1.msra.mxu0 0.0
  %986 = vmatprep.subr.mxu0 0.0
  %987 = vmatpush1.msra.mxu0 0.0
  %988 = vmatprep.subr.mxu0 0.0
  %989 = vmatpush1.msra.mxu0 0.0
  %990 = vmatprep.subr.mxu0 0.0
  %991 = vmatpush1.msra.mxu0 0.0
  %992 = vmatprep.subr.mxu0 0.0
  %993 = vmatpush1.msra.mxu0 0.0
  %994 = vmatprep.subr.mxu0 0.0
  %995 = vmatpush1.msra.mxu0 0.0
  %996 = vmatprep.subr.mxu0 0.0
  %997 = vmatpush1.msra.mxu0 0.0
  %998 = vmatprep.subr.mxu0 0.0
  %999 = vmatpush1.msra.mxu0 %v962
  %1000 = vmatprep.subr.mxu0 0.0
  %1001 = vmatpush1.msra.mxu0 %v961
  %1002 = vmatprep.subr.mxu0 0.0
  %1003 = vmatpush1.msra.mxu0 %v960
  %1004 = vmatprep.subr.mxu0 0.0
  %1005 = vmatpush1.msra.mxu0 %v959
  %1006 = vmatprep.subr.mxu0 0.0
  %1007 = vmatpush2.msra.mxu0 0.0
  %1008 = vmatprep.subr.mxu0 0.0
  %1009 = vmatpush2.msra.mxu0 0.0
  %1010 = vmatprep.subr.mxu0 0.0
  %1011 = vmatpush2.msra.mxu0 0.0
  %1012 = vmatprep.subr.mxu0 0.0
  %1013 = vmatpush2.msra.mxu0 0.0
  %1014 = vmatprep.subr.mxu0 0.0
  %1015 = vmatpush2.msra.mxu0 0.0
  %1016 = vmatprep.subr.mxu0 0.0
  %1017 = vmatpush2.msra.mxu0 0.0
  %1018 = vmatprep.subr.mxu0 0.0
  %1019 = vmatpush2.msra.mxu0 0.0
  %1020 = vmatprep.subr.mxu0 0.0
  %1021 = vmatpush2.msra.mxu0 0.0
  %1022 = vmatprep.subr.mxu0 0.0
  %1023 = vmatpush2.msra.mxu0 0.0
  %1024 = vmatprep.subr.mxu0 0.0
  %1025 = vmatpush2.msra.mxu0 0.0
  %1026 = vmatprep.subr.mxu0 0.0
  %1027 = vmatpush2.msra.mxu0 0.0
  %1028 = vmatprep.subr.mxu0 0.0
  %1029 = vmatpush2.msra.mxu0 0.0
  %1030 = vmatprep.subr.mxu0 0.0
  %1031 = vmatpush2.msra.mxu0 0.0
  %1032 = vmatprep.subr.mxu0 0.0
  %1033 = vmatpush2.msra.mxu0 0.0
  %1034 = vmatprep.subr.mxu0 0.0
  %1035 = vmatpush2.msra.mxu0 0.0
  %1036 = vmatprep.subr.mxu0 0.0
  %1037 = vmatpush2.msra.mxu0 0.0
  %1038 = vmatprep.mubr.f32.mxu0 0.0
  %1039 = vmatmul.mubr.f32.gmra.mxu0 %v972
  %v1040 = vpop.f32.mrf.mxu0
  %v1041 = vadd.f32 %v967, %v1040
  %v1042 = vpop.f32.mrf.mxu0
  %1043 = vdwg.mxu0
  %v1044 = vmul.f32 %v1041, %v1041
  %v1045 = vmul.f32 %v1041, %v1044
  %v1046 = vmul.f32 %v1045, 0.044715
  %v1047 = vadd.f32 %v1041, %v1046
  %v1048 = vmul.f32 %v1047, 0.7978846
  %v1049 = vtanh.pop %v1048
  %v1050 = vadd.f32 %v1049, 1.0
  %v1051 = vmul.f32 %v1050, 0.5
  %v1052 = vmul.f32 %v1041, %v1051
  %v1053 = vld [vmem:[%s1 + $0x60] sm:$0xff]
  %v1054 = vld [vmem:[%s1 + $0x68] sm:$0xff]
  %v1055 = vld [vmem:[%s1 + $0x70] sm:$0xff]
  %v1056 = vld [vmem:[%s1 + $0x78] sm:$0xff]
  %v1057 = vld [vmem:[%s1 + $0x80] sm:$0xff]
  %v1058 = vld [vmem:[%s1 + $0x88] sm:$0xff]
  %v1059 = vld [vmem:[%s1 + $0x90] sm:$0xff]
  %v1060 = vld [vmem:[%s1 + $0x98] sm:$0xff]
  %v1061 = vld [vmem:[%s1 + $0xa0] sm:$0xff]
  %v1062 = vld [vmem:[%s1 + $0xa8] sm:$0xff]
  %v1063 = vld [vmem:[%s1 + $0xb0] sm:$0xff]
  %v1064 = vld [vmem:[%s1 + $0xb8] sm:$0xff]
  %v1065 = vld [vmem:[%s1 + $0xc0] sm:$0xff]
  %v1066 = vld [vmem:[%s1 + $0xc8] sm:$0xff]
  %v1067 = vld [vmem:[%s1 + $0xd0] sm:$0xff]
  %v1068 = vld [vmem:[%s1 + $0xd8] sm:$0xff]
  %v1069 = vld [vmem:[%s2 + $0x7] sm:$0x1]
  %v1070 = vlaneseq
  %v1071 = vshrl.u32 %v1070, 7
  %v1072 = vsub.s32 0, %v1071
  %v1073 = vrot.slane %v1069, %v1072
  %1074 = vmatprep.subr.mxu0 0.0
  %1075 = vmatpush1.msra.mxu0 %v1068
  %1076 = vmatprep.subr.mxu0 0.0
  %1077 = vmatpush1.msra.mxu0 %v1067
  %1078 = vmatprep.subr.mxu0 0.0
  %1079 = vmatpush1.msra.mxu0 %v1066
  %1080 = vmatprep.subr.mxu0 0.0
  %1081 = vmatpush1.msra.mxu0 %v1065
  %1082 = vmatprep.subr.mxu0 0.0
  %1083 = vmatpush1.msra.mxu0 %v1064
  %1084 = vmatprep.subr.mxu0 0.0
  %1085 = vmatpush1.msra.mxu0 %v1063
  %1086 = vmatprep.subr.mxu0 0.0
  %1087 = vmatpush1.msra.mxu0 %v1062
  %1088 = vmatprep.subr.mxu0 0.0
  %1089 = vmatpush1.msra.mxu0 %v1061
  %1090 = vmatprep.subr.mxu0 0.0
  %1091 = vmatpush1.msra.mxu0 %v1060
  %1092 = vmatprep.subr.mxu0 0.0
  %1093 = vmatpush1.msra.mxu0 %v1059
  %1094 = vmatprep.subr.mxu0 0.0
  %1095 = vmatpush1.msra.mxu0 %v1058
  %1096 = vmatprep.subr.mxu0 0.0
  %1097 = vmatpush1.msra.mxu0 %v1057
  %1098 = vmatprep.subr.mxu0 0.0
  %1099 = vmatpush1.msra.mxu0 %v1056
  %1100 = vmatprep.subr.mxu0 0.0
  %1101 = vmatpush1.msra.mxu0 %v1055
  %1102 = vmatprep.subr.mxu0 0.0
  %1103 = vmatpush1.msra.mxu0 %v1054
  %1104 = vmatprep.subr.mxu0 0.0
  %1105 = vmatpush1.msra.mxu0 %v1053
  %1106 = vmatprep.subr.mxu0 0.0
  %1107 = vmatpush2.msra.mxu0 0.0
  %1108 = vmatprep.subr.mxu0 0.0
  %1109 = vmatpush2.msra.mxu0 0.0
  %1110 = vmatprep.subr.mxu0 0.0
  %1111 = vmatpush2.msra.mxu0 0.0
  %1112 = vmatprep.subr.mxu0 0.0
  %1113 = vmatpush2.msra.mxu0 0.0
  %1114 = vmatprep.subr.mxu0 0.0
  %1115 = vmatpush2.msra.mxu0 0.0
  %1116 = vmatprep.subr.mxu0 0.0
  %1117 = vmatpush2.msra.mxu0 0.0
  %1118 = vmatprep.subr.mxu0 0.0
  %1119 = vmatpush2.msra.mxu0 0.0
  %1120 = vmatprep.subr.mxu0 0.0
  %1121 = vmatpush2.msra.mxu0 0.0
  %1122 = vmatprep.subr.mxu0 0.0
  %1123 = vmatpush2.msra.mxu0 0.0
  %1124 = vmatprep.subr.mxu0 0.0
  %1125 = vmatpush2.msra.mxu0 0.0
  %1126 = vmatprep.subr.mxu0 0.0
  %1127 = vmatpush2.msra.mxu0 0.0
  %1128 = vmatprep.subr.mxu0 0.0
  %1129 = vmatpush2.msra.mxu0 0.0
  %1130 = vmatprep.subr.mxu0 0.0
  %1131 = vmatpush2.msra.mxu0 0.0
  %1132 = vmatprep.subr.mxu0 0.0
  %1133 = vmatpush2.msra.mxu0 0.0
  %1134 = vmatprep.subr.mxu0 0.0
  %1135 = vmatpush2.msra.mxu0 0.0
  %1136 = vmatprep.subr.mxu0 0.0
  %1137 = vmatpush2.msra.mxu0 0.0
  %1138 = vmatprep.mubr.f32.mxu0 0.0
  %1139 = vmatmul.mubr.f32.gmra.mxu0 %v1052
  %v1140 = vpop.f32.mrf.mxu0
  %v1141 = vadd.f32 %v1073, %v1140
  %v1142 = vpop.f32.mrf.mxu0
  %1143 = vdwg.mxu0
  %v1145 = vrot.slane %v1141, 1
  %v1148 = vadd.f32 %v957, %v1141
  %v1149 = vadd.f32 %v958, %v1145
  %v1150 = vld [vmem:[%s2 + $0x8] sm:$0x1]
  %v1151 = vld [vmem:[%s2 + $0x9] sm:$0x1]
  %v1154 = vrot.slane %v1149, 7
  %v1155 = vsel %vm811, %v1154, %v1148
  %v1157 = vsel %vm917, %v1155, 0.0
  %1158 = vadd.xlane.f32.xlu0 %v1157
  %v1159 = vpop.xlane.xlu0 %1158
  %v1160 = vmul.f32 %v1159, %v25
  %v1162 = vrot.slane %v1160, 1
  %v1165 = vsub.f32 %v1148, %v1160
  %v1166 = vsub.f32 %v1149, %v1162
  %v1167 = vmul.f32 %v1165, %v1165
  %v1168 = vmul.f32 %v1166, %v1166
  %v1171 = vrot.slane %v1168, 7
  %v1172 = vsel %vm811, %v1171, %v1167
  %v1174 = vsel %vm917, %v1172, 0.0
  %1175 = vadd.xlane.f32.xlu0 %v1174
  %v1176 = vpop.xlane.xlu0 %1175
  %v1177 = vmul.f32 %v1176, %v25
  %v1178 = vadd.f32 %v1177, 1e-12
  %v1179 = vrsqrt.pop %v1178
  %v1181 = vrot.slane %v1179, 1
  %v1184 = vmul.f32 %v1165, %v1179
  %v1185 = vmul.f32 %v1166, %v1181
  %v1186 = vlaneseq
  %v1187 = vshrl.u32 %v1186, 7
  %v1188 = vsub.s32 0, %v1187
  %v1189 = vrot.slane %v1150, %v1188
  %v1190 = vmul.f32 %v1184, %v1189
  %v1191 = vmul.f32 %v1185, %v1189
  %v1192 = vlaneseq
  %v1193 = vshrl.u32 %v1192, 7
  %v1194 = vsub.s32 0, %v1193
  %v1195 = vrot.slane %v1151, %v1194
  %v1196 = vadd.f32 %v1190, %v1195
  %v1197 = vadd.f32 %v1191, %v1195
  %v1198 = vmul.f32 %v1196, %v1196
  %v1199 = vmul.f32 %v1197, %v1197
  %v1202 = vrot.slane %v1199, 7
  %v1203 = vsel %vm811, %v1202, %v1198
  %v1205 = vsel %vm917, %v1203, 0.0
  %1206 = vadd.xlane.f32.xlu0 %v1205
  %v1207 = vpop.xlane.xlu0 %1206
  %v1208 = vmax.f32 %v1207, 1e-24
  %v1209 = vrsqrt.pop %v1208
  %v1211 = vrot.slane %v1209, 1
  %v1214 = vmul.f32 %v1196, %v1209
  %v1215 = vmul.f32 %v1197, %v1211
  %v1216 = vld [vmem:[%s1 + $0xe0] sm:$0xff]
  %v1217 = vld [vmem:[%s1 + $0xe8] sm:$0xff]
  %v1218 = vld [vmem:[%s1 + $0xf0] sm:$0xff]
  %v1219 = vld [vmem:[%s1 + $0xf8] sm:$0xff]
  %v1220 = vld [vmem:[%s2 + $0xa] sm:$0x1]
  %v1221 = vlaneseq
  %v1222 = vshrl.u32 %v1221, 7
  %v1223 = vsub.s32 0, %v1222
  %v1224 = vrot.slane %v1220, %v1223
  %v1227 = vrot.slane %v1215, 7
  %v1228 = vsel %vm811, %v1227, %v1214
  %v1229 = vsel %vm18, %v1228, 0
  %1231 = vmatprep.subr.mxu0 0.0
  %1232 = vmatpush1.msra.mxu0 0.0
  %1233 = vmatprep.subr.mxu0 0.0
  %1234 = vmatpush1.msra.mxu0 0.0
  %1235 = vmatprep.subr.mxu0 0.0
  %1236 = vmatpush1.msra.mxu0 0.0
  %1237 = vmatprep.subr.mxu0 0.0
  %1238 = vmatpush1.msra.mxu0 0.0
  %1239 = vmatprep.subr.mxu0 0.0
  %1240 = vmatpush1.msra.mxu0 0.0
  %1241 = vmatprep.subr.mxu0 0.0
  %1242 = vmatpush1.msra.mxu0 0.0
  %1243 = vmatprep.subr.mxu0 0.0
  %1244 = vmatpush1.msra.mxu0 0.0
  %1245 = vmatprep.subr.mxu0 0.0
  %1246 = vmatpush1.msra.mxu0 0.0
  %1247 = vmatprep.subr.mxu0 0.0
  %1248 = vmatpush1.msra.mxu0 0.0
  %1249 = vmatprep.subr.mxu0 0.0
  %1250 = vmatpush1.msra.mxu0 0.0
  %1251 = vmatprep.subr.mxu0 0.0
  %1252 = vmatpush1.msra.mxu0 0.0
  %1253 = vmatprep.subr.mxu0 0.0
  %1254 = vmatpush1.msra.mxu0 0.0
  %1255 = vmatprep.subr.mxu0 0.0
  %1256 = vmatpush1.msra.mxu0 %v1219
  %1257 = vmatprep.subr.mxu0 0.0
  %1258 = vmatpush1.msra.mxu0 %v1218
  %1259 = vmatprep.subr.mxu0 0.0
  %1260 = vmatpush1.msra.mxu0 %v1217
  %1261 = vmatprep.subr.mxu0 0.0
  %1262 = vmatpush1.msra.mxu0 %v1216
  %1263 = vmatprep.subr.mxu0 0.0
  %1264 = vmatpush2.msra.mxu0 0.0
  %1265 = vmatprep.subr.mxu0 0.0
  %1266 = vmatpush2.msra.mxu0 0.0
  %1267 = vmatprep.subr.mxu0 0.0
  %1268 = vmatpush2.msra.mxu0 0.0
  %1269 = vmatprep.subr.mxu0 0.0
  %1270 = vmatpush2.msra.mxu0 0.0
  %1271 = vmatprep.subr.mxu0 0.0
  %1272 = vmatpush2.msra.mxu0 0.0
  %1273 = vmatprep.subr.mxu0 0.0
  %1274 = vmatpush2.msra.mxu0 0.0
  %1275 = vmatprep.subr.mxu0 0.0
  %1276 = vmatpush2.msra.mxu0 0.0
  %1277 = vmatprep.subr.mxu0 0.0
  %1278 = vmatpush2.msra.mxu0 0.0
  %1279 = vmatprep.subr.mxu0 0.0
  %1280 = vmatpush2.msra.mxu0 0.0
  %1281 = vmatprep.subr.mxu0 0.0
  %1282 = vmatpush2.msra.mxu0 0.0
  %1283 = vmatprep.subr.mxu0 0.0
  %1284 = vmatpush2.msra.mxu0 0.0
  %1285 = vmatprep.subr.mxu0 0.0
  %1286 = vmatpush2.msra.mxu0 0.0
  %1287 = vmatprep.subr.mxu0 0.0
  %1288 = vmatpush2.msra.mxu0 0.0
  %1289 = vmatprep.subr.mxu0 0.0
  %1290 = vmatpush2.msra.mxu0 0.0
  %1291 = vmatprep.subr.mxu0 0.0
  %1292 = vmatpush2.msra.mxu0 0.0
  %1293 = vmatprep.subr.mxu0 0.0
  %1294 = vmatpush2.msra.mxu0 0.0
  %1295 = vmatprep.mubr.f32.mxu0 0.0
  %1296 = vmatmul.mubr.f32.gmra.mxu0 %v1229
  %v1297 = vpop.f32.mrf.mxu0
  %v1298 = vadd.f32 %v1224, %v1297
  %v1299 = vpop.f32.mrf.mxu0
  %1300 = vdwg.mxu0
  %v1303 = vrot.slane %v1298, 6
  %vm1305 = vcmask 1041408
  %v1306 = vsel %vm1305, %v1228, %v1303
  %vm1307 = vcmask 257024
  %1308 = vst.msk [vmem:[%s3] sm:$0xf] %vm1307, %v1306
  // Predicated region
  $region14: #{supcon_forward.1} parent=0 // pred_check
    _
  $region15: #{supcon_forward.1} parent=0 // pred_check_branch
    %1310 = sbr.rel (0) target = $region17
  $region16: #{supcon_forward.1} parent=0 // pred_region
    _
  $region17: #{supcon_forward.1} parent=0 // pred_fallthru
    _
  // Predicated region
  $region18: #{supcon_forward.1} parent=0 // pred_check
    _
  $region19: #{supcon_forward.1} parent=0 // pred_check_branch
    %1312 = sbr.rel (0) target = $region21
  $region20: #{supcon_forward.1} parent=0 // pred_region
    _
  $region21: #{supcon_forward.1} parent=0 // pred_fallthru
    _

</llo_original>
